<compile_context>
chip_gen: v6e
topology: v6e:2x2x1
jax: 0.10.0
libtpu: 0.0.40
codegen_flags: <defaults>
</compile_context>

<pallas_src>
import functools

import jax
import jax.numpy as jnp
import numpy as np
from jax import lax
from jax.experimental import pallas as pl
from jax.experimental.pallas import tpu as pltpu


# ----------------------------------------------------------------------------
# Fused kernel: tcn1 (+t_conv) -> tcn2 -> LayerNorm -> SpatialBlock -> +shortcut
# Per-grid-step slab layout: (C, N) with N = bb * V * T (lane-dense, bb batches
# stacked along lanes).
# ----------------------------------------------------------------------------
def _upblock_kernel(x_ref, bias1_ref, mask_ref, w1_ref, w2_ref, scw_ref,
                    colb_ref, lnwb_ref, seg_ref, theta_ref, gk_ref, o_ref,
                    *, C_out, K, ln_n, eps, shifts):
    f32, bf16 = jnp.float32, jnp.bfloat16
    x = x_ref[0]                                    # (C_tot, N) f32
    mask = mask_ref[...]                            # (9, N) f32 boundary masks

    def conv3x3(h, w_ref):
        # Causal (3,3) conv (pad (1,2) + chomp(2)) as roll+mask im2col feeding
        # ONE deep MXU matmul.  Rolls land on the XLU slot; the masks zero the
        # taps that fall off the (V, T) grid (and any cross-batch-slab wrap of
        # the cyclic roll), so the result is exact.
        pieces = []
        for k, s in enumerate(shifts):
            r = h if s == 0 else pltpu.roll(h, s, 1)
            pieces.append(r * mask[k])
        cols = jnp.concatenate(pieces, axis=0).astype(bf16)   # (9*C, N)
        return jnp.dot(w_ref[...], cols, preferred_element_type=f32)

    # Both 1x1 shortcut projections of the block input in one stacked matmul.
    sc = jnp.dot(scw_ref[...], x.astype(bf16), preferred_element_type=f32)

    colb = colb_ref[...]                            # (C_out, 3) per-chan biases
    b2, spb, scfb = colb[:, 0:1], colb[:, 1:2], colb[:, 2:3]

    # ---- TcnBlock 1 + 1x1 shortcut conv + t_conv (biases pre-folded) -------
    h = conv3x3(x, w1_ref) + sc[:C_out] + bias1_ref[0]

    # ---- TcnBlock 2 (identity shortcut) -------------------------------------
    h = h + b2 + conv3x3(h, w2_ref)

    # ---- LayerNorm over (V, C) per (batch, time) group ----------------------
    # seg[(b,t), lane] is a 0/1 indicator; per-group sums are MXU matmuls,
    # the channel reduction is a sublane (XLU) sum.
    seg = seg_ref[...]                              # (bb*T, N) bf16, exact 0/1
    inv_n = 1.0 / ln_n
    csum = lax.dot_general(h.astype(bf16), seg, (((1,), (1,)), ((), ())),
                           preferred_element_type=f32)        # (C, bb*T)
    mean_g = jnp.sum(csum, axis=0, keepdims=True) * inv_n     # (1, bb*T)
    mean = jnp.dot(mean_g.astype(bf16), seg, preferred_element_type=f32)
    cen = h - mean
    vsum = lax.dot_general((cen * cen).astype(bf16), seg,
                           (((1,), (1,)), ((), ())),
                           preferred_element_type=f32)        # (C, bb*T)
    var_g = jnp.sum(vsum, axis=0, keepdims=True) * inv_n
    var = jnp.dot(var_g.astype(bf16), seg, preferred_element_type=f32)
    lnwb = lnwb_ref[...]                            # (2*C_out, N) f32
    h = cen * lax.rsqrt(var + eps) * lnwb[:C_out] + lnwb[C_out:]

    # ---- SpatialBlock: relu(sum_k theta_k^T @ h @ Gk + b + h) ---------------
    z_all = jnp.dot(theta_ref[...], h.astype(bf16),
                    preferred_element_type=f32)               # (K*C_out, N)
    acc = jnp.zeros_like(h)
    for k in range(K):
        zk = z_all[k * C_out:(k + 1) * C_out].astype(bf16)
        acc = acc + jnp.dot(zk, gk_ref[k], preferred_element_type=f32)
    h = jnp.maximum(acc + spb + h, 0.0)

    # ---- Final residual: + 1x1 conv shortcut of the block input -------------
    o_ref[0] = h + sc[C_out:] + scfb


# ----------------------------------------------------------------------------
# One-time parameter / constant repacking (hoisted out of the forward path).
# ----------------------------------------------------------------------------
def prepare_params(params, supports, V, T, batch_block=2):
    F, bb = V * T, batch_block
    N = bb * F
    C_out = params["conv1_w"].shape[0]
    K = supports.shape[0]
    bf16 = jnp.bfloat16

    # Conv weights in im2col order: W[o, (kv*3+kt)*C_in + c] = w[o, c, kv, kt].
    def conv_w_im2col(w):
        return jnp.transpose(w, (0, 2, 3, 1)).reshape(
            w.shape[0], 9 * w.shape[1]).astype(bf16)

    # Per-tap (output-indexed) validity masks for the pad(1,2)+chomp(2) conv.
    mask = np.zeros((9, F), np.float32)
    for kv in range(3):
        for kt in range(3):
            k, dv, dt = kv * 3 + kt, kv - 1, kt - 2
            for v in range(V):
                for tt in range(T):
                    if 0 <= v + dv < V and 0 <= tt + dt < T:
                        mask[k, v * T + tt] = 1.0
    mask9 = jnp.asarray(np.tile(mask, (1, bb)))

    # Per-(batch, time)-group indicator for the LayerNorm statistics.
    seg = np.zeros((bb * T, N), np.float32)
    for b in range(bb):
        for tt in range(T):
            seg[b * T + tt, b * F + np.arange(V) * T + tt] = 1.0
    seg = jnp.asarray(seg).astype(bf16)             # 0/1 -> exact in bf16

    # Graph operators: block-diag over the lane-stacked batches of
    # kron(Lk^T, I_T).  Dense & quadratic in V*T -- fine at F=128 (see note).
    sup = np.asarray(supports, np.float32)
    eye_t, eye_b = np.eye(T, dtype=np.float32), np.eye(bb, dtype=np.float32)
    gk = jnp.asarray(np.stack(
        [np.kron(eye_b, np.kron(sup[k].T, eye_t)) for k in range(K)]
    )).astype(bf16)

    # LayerNorm affine params in the lane-stacked layout, packed in one slab.
    lnw = jnp.broadcast_to(params["ln_w"].T[:, :, None],
                           (C_out, V, T)).reshape(C_out, F)
    lnb = jnp.broadcast_to(params["ln_b"].T[:, :, None],
                           (C_out, V, T)).reshape(C_out, F)
    lnwb = jnp.tile(jnp.concatenate([lnw, lnb], 0), (1, bb)).astype(jnp.float32)

    # Both 1x1 shortcut projections stacked into one weight matrix.
    scw = jnp.concatenate([params["sc1_w"], params["scf_w"]], 0).astype(bf16)

    # Remaining per-channel bias columns packed into one (C_out, 3) operand.
    colb = jnp.stack([params["conv2_b"], params["sp_b"].reshape(C_out),
                      params["scf_b"]], axis=1).astype(jnp.float32)

    theta = jnp.transpose(params["theta"], (2, 1, 0)).reshape(
        K * C_out, C_out).astype(bf16)

    return dict(
        mask9=mask9,
        w1=conv_w_im2col(params["conv1_w"]),
        w2=conv_w_im2col(params["conv2_w"]),
        scw=scw, colb=colb, lnwb=lnwb, seg=seg, theta=theta, gk=gk,
        tconv_w=params["tconv_w"].astype(jnp.float32),
        bias1_vec=(params["conv1_b"] + params["sc1_b"]
                   + params["tconv_b"]).astype(jnp.float32),
    )


# ----------------------------------------------------------------------------
# Forward wrapper: single pallas_call; bb batches lane-stacked per grid step.
# ----------------------------------------------------------------------------
def up_block_forward(prep, x, t):
    B, C_tot, V, T = x.shape
    F = V * T
    C_out = prep["colb"].shape[0]
    K = prep["gk"].shape[0]
    N = prep["gk"].shape[1]
    bb = N // F                       # batches lane-stacked per grid step
    assert B % bb == 0, "batch must be a multiple of the prepared batch block"
    G = B // bb

    # Lane-stack bb batches per grid step: (G, C, bb*F) with lanes = 128*bb.
    def stack(a):
        return a.reshape(G, bb, a.shape[1], F).transpose(0, 2, 1, 3) \
                .reshape(G, a.shape[1], N)

    xs = stack(x.reshape(B, C_tot, F))

    # t_conv output + (conv1_b + sc1_b + tconv_b) folded into one input slab.
    temb = t.astype(jnp.float32) @ prep["tconv_w"].T + prep["bias1_vec"]
    bias1 = stack(jnp.broadcast_to(temb[:, :, None], (B, C_out, F)))

    # Static per-tap lane shifts of the causal conv (roll is cyclic; the masks
    # zero any cross-boundary wrap).
    shifts = tuple((-((kv - 1) * T + (kt - 2))) % N
                   for kv in range(3) for kt in range(3))

    kernel = functools.partial(_upblock_kernel, C_out=C_out, K=K,
                               ln_n=float(V * C_out), eps=1e-5, shifts=shifts)
    rep = lambda a: pl.BlockSpec(a.shape, lambda g: (0,) * a.ndim)

    out = pl.pallas_call(
        kernel,
        out_shape=jax.ShapeDtypeStruct((G, C_out, N), jnp.float32),
        grid=(G,),
        in_specs=[
            pl.BlockSpec((1, C_tot, N), lambda g: (g, 0, 0)),
            pl.BlockSpec((1, C_out, N), lambda g: (g, 0, 0)),
            rep(prep["mask9"]), rep(prep["w1"]), rep(prep["w2"]),
            rep(prep["scw"]), rep(prep["colb"]), rep(prep["lnwb"]),
            rep(prep["seg"]), rep(prep["theta"]), rep(prep["gk"]),
        ],
        out_specs=pl.BlockSpec((1, C_out, N), lambda g: (g, 0, 0)),
        compiler_params=pltpu.CompilerParams(
            dimension_semantics=("parallel",)),
    )(xs, bias1, prep["mask9"], prep["w1"], prep["w2"], prep["scw"],
      prep["colb"], prep["lnwb"], prep["seg"], prep["theta"], prep["gk"])

    out = out.reshape(G, C_out, bb, F).transpose(0, 2, 1, 3)
    return out.reshape(B, C_out, V, T)


# ----------------------------------------------------------------------------
# Pure-JAX reference (mirrors the PyTorch module) for correctness checking.
# ----------------------------------------------------------------------------
def ref_forward(params, x, t, Lk):
    def conv3x3(xx, w, b):
        Vv, Tt = xx.shape[2], xx.shape[3]
        xp = jnp.pad(xx, ((0, 0), (0, 0), (1, 1), (2, 0)))
        acc = jnp.zeros((xx.shape[0], w.shape[0], Vv, Tt), jnp.float32)
        for kv in range(3):
            for kt in range(3):
                acc = acc + jnp.einsum("oc,bcvt->bovt", w[:, :, kv, kt],
                                       xp[:, :, kv:kv + Vv, kt:kt + Tt])
        return acc + b[None, :, None, None]

    h = conv3x3(x, params["conv1_w"], params["conv1_b"])
    h = h + jnp.einsum("oc,bcvt->bovt", params["sc1_w"], x) \
          + params["sc1_b"][None, :, None, None]
    h = h + (t @ params["tconv_w"].T + params["tconv_b"])[:, :, None, None]
    h = conv3x3(h, params["conv2_w"], params["conv2_b"]) + h
    ht = jnp.transpose(h, (0, 3, 2, 1))
    mean = ht.mean(axis=(-2, -1), keepdims=True)
    var = jnp.square(ht - mean).mean(axis=(-2, -1), keepdims=True)
    ht = (ht - mean) * lax.rsqrt(var + 1e-5) * params["ln_w"] + params["ln_b"]
    h = jnp.transpose(ht, (0, 3, 2, 1))
    hs = jnp.transpose(h, (0, 1, 3, 2))
    x_c = jnp.einsum("knm,bitm->bitkn", Lk, hs)
    x_gc = jnp.einsum("iok,bitkn->botn", params["theta"], x_c) + params["sp_b"]
    hs = jax.nn.relu(x_gc + hs)
    h = jnp.transpose(hs, (0, 1, 3, 2))
    return h + jnp.einsum("oc,bcvt->bovt", params["scf_w"], x) \
             + params["scf_b"][None, :, None, None]


# ----------------------------------------------------------------------------
if __name__ == "__main__":
    # V*T = 128 -> one full lane group per batch; 2 batches stacked -> N = 256.
    B, c_in, c_out, V, T, d_h, K = 2, 8, 8, 16, 8, 32, 2
    c_tot = c_in + c_out              # UpBlock input channels = c_in + c_out

    key = jax.random.PRNGKey(0)
    ks = jax.random.split(key, 17)

    def rnd(k, shape, scale=0.1):
        return (scale * jax.random.normal(k, shape)).astype(jnp.float32)

    params = dict(
        conv1_w=rnd(ks[0], (c_out, c_tot, 3, 3)),
        conv1_b=rnd(ks[1], (c_out,)),
        sc1_w=rnd(ks[2], (c_out, c_tot)),          # tcn1 1x1 shortcut conv
        sc1_b=rnd(ks[3], (c_out,)),
        tconv_w=rnd(ks[4], (c_out, d_h)),          # t_conv 1x1
        tconv_b=rnd(ks[5], (c_out,)),
        conv2_w=rnd(ks[6], (c_out, c_out, 3, 3)),
        conv2_b=rnd(ks[7], (c_out,)),
        ln_w=(1.0 + rnd(ks[8], (V, c_out))).astype(jnp.float32),
        ln_b=rnd(ks[9], (V, c_out)),
        theta=rnd(ks[10], (c_out, c_out, K), scale=0.3),
        sp_b=rnd(ks[11], (1, c_out, 1, 1)),
        scf_w=rnd(ks[12], (c_out, c_tot)),         # final 1x1 shortcut conv
        scf_b=rnd(ks[13], (c_out,)),
    )

    x = jax.random.normal(ks[14], (B, c_tot, V, T), dtype=jnp.float32)
    t = jax.random.normal(ks[15], (B, d_h), dtype=jnp.float32)
    supports = 0.2 * jax.random.normal(ks[16], (K, V, V), dtype=jnp.float32)

    prep = prepare_params(params, supports, V, T, batch_block=min(2, B))
    fwd = jax.jit(up_block_forward)
    out = jax.block_until_ready(fwd(prep, x, t))

    # Reference at full f32 matmul precision; bf16 MXU operands in the kernel
    # match the previous default-precision behaviour, covered by this bound.
    with jax.default_matmul_precision("highest"):
        ref = ref_forward(params, x, t, supports)
    np.testing.assert_allclose(np.asarray(out), np.asarray(ref),
                               rtol=2e-2, atol=2e-2)
    print("KERNEL_OK")
</pallas_src>

<mosaic_0001>
module attributes {stable_mosaic.version = 11 : i64} {
  func.func @_upblock_kernel(%arg0: i32, %arg1: memref<1x16x256xf32, #tpu.memory_space<vmem>>, %arg2: memref<1x8x256xf32, #tpu.memory_space<vmem>>, %arg3: memref<9x256xf32, #tpu.memory_space<vmem>>, %arg4: memref<8x144xbf16, #tpu.memory_space<vmem>>, %arg5: memref<8x72xbf16, #tpu.memory_space<vmem>>, %arg6: memref<16x16xbf16, #tpu.memory_space<vmem>>, %arg7: memref<8x3xf32, #tpu.memory_space<vmem>>, %arg8: memref<16x256xf32, #tpu.memory_space<vmem>>, %arg9: memref<16x256xbf16, #tpu.memory_space<vmem>>, %arg10: memref<16x8xbf16, #tpu.memory_space<vmem>>, %arg11: memref<2x256x256xbf16, #tpu.memory_space<vmem>>, %arg12: memref<1x8x256xf32, #tpu.memory_space<vmem>>) attributes {dimension_semantics = [#tpu.dimension_semantics<parallel>], iteration_bounds = array<i64: 1>, scalar_prefetch = 0 : i64, scratch_operands = 0 : i64, tpu.core_type = #tpu.core_type<tc>, window_params = [{transform_indices = @transform_0, window_bounds = array<i64: 1, 16, 256>}, {transform_indices = @transform_1, window_bounds = array<i64: 1, 8, 256>}, {pipeline_mode = #tpu.pipeline_mode<synchronous>, transform_indices = @transform_2, window_bounds = array<i64: 9, 256>}, {pipeline_mode = #tpu.pipeline_mode<synchronous>, transform_indices = @transform_3, window_bounds = array<i64: 8, 144>}, {pipeline_mode = #tpu.pipeline_mode<synchronous>, transform_indices = @transform_4, window_bounds = array<i64: 8, 72>}, {pipeline_mode = #tpu.pipeline_mode<synchronous>, transform_indices = @transform_5, window_bounds = array<i64: 16, 16>}, {pipeline_mode = #tpu.pipeline_mode<synchronous>, transform_indices = @transform_6, window_bounds = array<i64: 8, 3>}, {pipeline_mode = #tpu.pipeline_mode<synchronous>, transform_indices = @transform_7, window_bounds = array<i64: 16, 256>}, {pipeline_mode = #tpu.pipeline_mode<synchronous>, transform_indices = @transform_8, window_bounds = array<i64: 16, 256>}, {pipeline_mode = #tpu.pipeline_mode<synchronous>, transform_indices = @transform_9, window_bounds = array<i64: 16, 8>}, {pipeline_mode = #tpu.pipeline_mode<synchronous>, transform_indices = @transform_10, window_bounds = array<i64: 2, 256, 256>}, {transform_indices = @transform_11, window_bounds = array<i64: 1, 8, 256>}]} {
    %c0 = arith.constant 0 : index
    %c0_0 = arith.constant 0 : index
    %c0_1 = arith.constant 0 : index
    %0 = vector.load %arg1[%c0, %c0_0, %c0_1] : memref<1x16x256xf32, #tpu.memory_space<vmem>>, vector<1x16x256xf32>
    %1 = vector.shape_cast %0 : vector<1x16x256xf32> to vector<16x256xf32>
    %c0_2 = arith.constant 0 : index
    %c0_3 = arith.constant 0 : index
    %2 = vector.load %arg3[%c0_2, %c0_3] : memref<9x256xf32, #tpu.memory_space<vmem>>, vector<9x256xf32>
    %c0_4 = arith.constant 0 : index
    %c0_5 = arith.constant 0 : index
    %3 = vector.load %arg6[%c0_4, %c0_5] : memref<16x16xbf16, #tpu.memory_space<vmem>>, vector<16x16xbf16>
    %4 = arith.truncf %1 : vector<16x256xf32> to vector<16x256xbf16>
    %cst = arith.constant dense<0.000000e+00> : vector<16x256xf32>
    %5 = tpu.matmul %3, %4, %cst {dimension_numbers = #tpu.dot_dimension_numbers<[1], [0], [0], [1], [0, 0, 1, 1], [], []>} : vector<16x16xbf16>, vector<16x256xbf16>, vector<16x256xf32> -> vector<16x256xf32>
    %c0_6 = arith.constant 0 : index
    %c0_7 = arith.constant 0 : index
    %6 = vector.load %arg7[%c0_6, %c0_7] : memref<8x3xf32, #tpu.memory_space<vmem>>, vector<8x3xf32>
    %7 = vector.extract_strided_slice %6 {offsets = [0, 0], sizes = [8, 1], strides = [1, 1]} : vector<8x3xf32> to vector<8x1xf32>
    %8 = vector.extract_strided_slice %6 {offsets = [0, 1], sizes = [8, 1], strides = [1, 1]} : vector<8x3xf32> to vector<8x1xf32>
    %9 = vector.extract_strided_slice %6 {offsets = [0, 2], sizes = [8, 1], strides = [1, 1]} : vector<8x3xf32> to vector<8x1xf32>
    %c10_i32 = arith.constant 10 : i32
    %10 = tpu.dynamic_rotate %1 by %c10_i32 dim 1 : vector<16x256xf32>, i32 -> vector<16x256xf32>
    %11 = vector.extract_strided_slice %2 {offsets = [0, 0], sizes = [1, 256], strides = [1, 1]} : vector<9x256xf32> to vector<1x256xf32>
    %12 = vector.shape_cast %11 : vector<1x256xf32> to vector<256xf32>
    %13 = vector.shape_cast %12 : vector<256xf32> to vector<1x256xf32>
    %14 = vector.broadcast %13 : vector<1x256xf32> to vector<16x256xf32>
    %15 = arith.mulf %10, %14 : vector<16x256xf32>
    %c9_i32 = arith.constant 9 : i32
    %16 = tpu.dynamic_rotate %1 by %c9_i32 dim 1 : vector<16x256xf32>, i32 -> vector<16x256xf32>
    %17 = vector.extract_strided_slice %2 {offsets = [1, 0], sizes = [1, 256], strides = [1, 1]} : vector<9x256xf32> to vector<1x256xf32>
    %18 = vector.shape_cast %17 : vector<1x256xf32> to vector<256xf32>
    %19 = vector.shape_cast %18 : vector<256xf32> to vector<1x256xf32>
    %20 = vector.broadcast %19 : vector<1x256xf32> to vector<16x256xf32>
    %21 = arith.mulf %16, %20 : vector<16x256xf32>
    %c8_i32 = arith.constant 8 : i32
    %22 = tpu.dynamic_rotate %1 by %c8_i32 dim 1 : vector<16x256xf32>, i32 -> vector<16x256xf32>
    %23 = vector.extract_strided_slice %2 {offsets = [2, 0], sizes = [1, 256], strides = [1, 1]} : vector<9x256xf32> to vector<1x256xf32>
    %24 = vector.shape_cast %23 : vector<1x256xf32> to vector<256xf32>
    %25 = vector.shape_cast %24 : vector<256xf32> to vector<1x256xf32>
    %26 = vector.broadcast %25 : vector<1x256xf32> to vector<16x256xf32>
    %27 = arith.mulf %22, %26 : vector<16x256xf32>
    %c2_i32 = arith.constant 2 : i32
    %28 = tpu.dynamic_rotate %1 by %c2_i32 dim 1 : vector<16x256xf32>, i32 -> vector<16x256xf32>
    %29 = vector.extract_strided_slice %2 {offsets = [3, 0], sizes = [1, 256], strides = [1, 1]} : vector<9x256xf32> to vector<1x256xf32>
    %30 = vector.shape_cast %29 : vector<1x256xf32> to vector<256xf32>
    %31 = vector.shape_cast %30 : vector<256xf32> to vector<1x256xf32>
    %32 = vector.broadcast %31 : vector<1x256xf32> to vector<16x256xf32>
    %33 = arith.mulf %28, %32 : vector<16x256xf32>
    %c1_i32 = arith.constant 1 : i32
    %34 = tpu.dynamic_rotate %1 by %c1_i32 dim 1 : vector<16x256xf32>, i32 -> vector<16x256xf32>
    %35 = vector.extract_strided_slice %2 {offsets = [4, 0], sizes = [1, 256], strides = [1, 1]} : vector<9x256xf32> to vector<1x256xf32>
    %36 = vector.shape_cast %35 : vector<1x256xf32> to vector<256xf32>
    %37 = vector.shape_cast %36 : vector<256xf32> to vector<1x256xf32>
    %38 = vector.broadcast %37 : vector<1x256xf32> to vector<16x256xf32>
    %39 = arith.mulf %34, %38 : vector<16x256xf32>
    %40 = vector.extract_strided_slice %2 {offsets = [5, 0], sizes = [1, 256], strides = [1, 1]} : vector<9x256xf32> to vector<1x256xf32>
    %41 = vector.shape_cast %40 : vector<1x256xf32> to vector<256xf32>
    %42 = vector.shape_cast %41 : vector<256xf32> to vector<1x256xf32>
    %43 = vector.broadcast %42 : vector<1x256xf32> to vector<16x256xf32>
    %44 = arith.mulf %1, %43 : vector<16x256xf32>
    %c250_i32 = arith.constant 250 : i32
    %45 = tpu.dynamic_rotate %1 by %c250_i32 dim 1 : vector<16x256xf32>, i32 -> vector<16x256xf32>
    %46 = vector.extract_strided_slice %2 {offsets = [6, 0], sizes = [1, 256], strides = [1, 1]} : vector<9x256xf32> to vector<1x256xf32>
    %47 = vector.shape_cast %46 : vector<1x256xf32> to vector<256xf32>
    %48 = vector.shape_cast %47 : vector<256xf32> to vector<1x256xf32>
    %49 = vector.broadcast %48 : vector<1x256xf32> to vector<16x256xf32>
    %50 = arith.mulf %45, %49 : vector<16x256xf32>
    %c249_i32 = arith.constant 249 : i32
    %51 = tpu.dynamic_rotate %1 by %c249_i32 dim 1 : vector<16x256xf32>, i32 -> vector<16x256xf32>
    %52 = vector.extract_strided_slice %2 {offsets = [7, 0], sizes = [1, 256], strides = [1, 1]} : vector<9x256xf32> to vector<1x256xf32>
    %53 = vector.shape_cast %52 : vector<1x256xf32> to vector<256xf32>
    %54 = vector.shape_cast %53 : vector<256xf32> to vector<1x256xf32>
    %55 = vector.broadcast %54 : vector<1x256xf32> to vector<16x256xf32>
    %56 = arith.mulf %51, %55 : vector<16x256xf32>
    %c248_i32 = arith.constant 248 : i32
    %57 = tpu.dynamic_rotate %1 by %c248_i32 dim 1 : vector<16x256xf32>, i32 -> vector<16x256xf32>
    %58 = vector.extract_strided_slice %2 {offsets = [8, 0], sizes = [1, 256], strides = [1, 1]} : vector<9x256xf32> to vector<1x256xf32>
    %59 = vector.shape_cast %58 : vector<1x256xf32> to vector<256xf32>
    %60 = vector.shape_cast %59 : vector<256xf32> to vector<1x256xf32>
    %61 = vector.broadcast %60 : vector<1x256xf32> to vector<16x256xf32>
    %62 = arith.mulf %57, %61 : vector<16x256xf32>
    %63 = tpu.concatenate %15, %21, %27, %33, %39, %44, %50, %56, %62 in 0 : vector<16x256xf32>, vector<16x256xf32>, vector<16x256xf32>, vector<16x256xf32>, vector<16x256xf32>, vector<16x256xf32>, vector<16x256xf32>, vector<16x256xf32>, vector<16x256xf32> -> vector<144x256xf32>
    %64 = arith.truncf %63 : vector<144x256xf32> to vector<144x256xbf16>
    %c0_8 = arith.constant 0 : index
    %c0_9 = arith.constant 0 : index
    %65 = vector.load %arg4[%c0_8, %c0_9] : memref<8x144xbf16, #tpu.memory_space<vmem>>, vector<8x144xbf16>
    %cst_10 = arith.constant dense<0.000000e+00> : vector<8x256xf32>
    %66 = tpu.matmul %65, %64, %cst_10 {dimension_numbers = #tpu.dot_dimension_numbers<[1], [0], [0], [1], [0, 0, 1, 1], [], []>} : vector<8x144xbf16>, vector<144x256xbf16>, vector<8x256xf32> -> vector<8x256xf32>
    %67 = vector.extract_strided_slice %5 {offsets = [0, 0], sizes = [8, 256], strides = [1, 1]} : vector<16x256xf32> to vector<8x256xf32>
    %68 = arith.addf %66, %67 : vector<8x256xf32>
    %c0_11 = arith.constant 0 : index
    %c0_12 = arith.constant 0 : index
    %c0_13 = arith.constant 0 : index
    %69 = vector.load %arg2[%c0_11, %c0_12, %c0_13] : memref<1x8x256xf32, #tpu.memory_space<vmem>>, vector<1x8x256xf32>
    %70 = vector.shape_cast %69 : vector<1x8x256xf32> to vector<8x256xf32>
    %71 = arith.addf %68, %70 : vector<8x256xf32>
    %72 = vector.broadcast %7 : vector<8x1xf32> to vector<8x256xf32>
    %73 = arith.addf %71, %72 : vector<8x256xf32>
    %c10_i32_14 = arith.constant 10 : i32
    %74 = tpu.dynamic_rotate %71 by %c10_i32_14 dim 1 : vector<8x256xf32>, i32 -> vector<8x256xf32>
    %75 = vector.extract_strided_slice %2 {offsets = [0, 0], sizes = [1, 256], strides = [1, 1]} : vector<9x256xf32> to vector<1x256xf32>
    %76 = vector.shape_cast %75 : vector<1x256xf32> to vector<256xf32>
    %77 = vector.shape_cast %76 : vector<256xf32> to vector<1x256xf32>
    %78 = vector.broadcast %77 : vector<1x256xf32> to vector<8x256xf32>
    %79 = arith.mulf %74, %78 : vector<8x256xf32>
    %c9_i32_15 = arith.constant 9 : i32
    %80 = tpu.dynamic_rotate %71 by %c9_i32_15 dim 1 : vector<8x256xf32>, i32 -> vector<8x256xf32>
    %81 = vector.extract_strided_slice %2 {offsets = [1, 0], sizes = [1, 256], strides = [1, 1]} : vector<9x256xf32> to vector<1x256xf32>
    %82 = vector.shape_cast %81 : vector<1x256xf32> to vector<256xf32>
    %83 = vector.shape_cast %82 : vector<256xf32> to vector<1x256xf32>
    %84 = vector.broadcast %83 : vector<1x256xf32> to vector<8x256xf32>
    %85 = arith.mulf %80, %84 : vector<8x256xf32>
    %c8_i32_16 = arith.constant 8 : i32
    %86 = tpu.dynamic_rotate %71 by %c8_i32_16 dim 1 : vector<8x256xf32>, i32 -> vector<8x256xf32>
    %87 = vector.extract_strided_slice %2 {offsets = [2, 0], sizes = [1, 256], strides = [1, 1]} : vector<9x256xf32> to vector<1x256xf32>
    %88 = vector.shape_cast %87 : vector<1x256xf32> to vector<256xf32>
    %89 = vector.shape_cast %88 : vector<256xf32> to vector<1x256xf32>
    %90 = vector.broadcast %89 : vector<1x256xf32> to vector<8x256xf32>
    %91 = arith.mulf %86, %90 : vector<8x256xf32>
    %c2_i32_17 = arith.constant 2 : i32
    %92 = tpu.dynamic_rotate %71 by %c2_i32_17 dim 1 : vector<8x256xf32>, i32 -> vector<8x256xf32>
    %93 = vector.extract_strided_slice %2 {offsets = [3, 0], sizes = [1, 256], strides = [1, 1]} : vector<9x256xf32> to vector<1x256xf32>
    %94 = vector.shape_cast %93 : vector<1x256xf32> to vector<256xf32>
    %95 = vector.shape_cast %94 : vector<256xf32> to vector<1x256xf32>
    %96 = vector.broadcast %95 : vector<1x256xf32> to vector<8x256xf32>
    %97 = arith.mulf %92, %96 : vector<8x256xf32>
    %c1_i32_18 = arith.constant 1 : i32
    %98 = tpu.dynamic_rotate %71 by %c1_i32_18 dim 1 : vector<8x256xf32>, i32 -> vector<8x256xf32>
    %99 = vector.extract_strided_slice %2 {offsets = [4, 0], sizes = [1, 256], strides = [1, 1]} : vector<9x256xf32> to vector<1x256xf32>
    %100 = vector.shape_cast %99 : vector<1x256xf32> to vector<256xf32>
    %101 = vector.shape_cast %100 : vector<256xf32> to vector<1x256xf32>
    %102 = vector.broadcast %101 : vector<1x256xf32> to vector<8x256xf32>
    %103 = arith.mulf %98, %102 : vector<8x256xf32>
    %104 = vector.extract_strided_slice %2 {offsets = [5, 0], sizes = [1, 256], strides = [1, 1]} : vector<9x256xf32> to vector<1x256xf32>
    %105 = vector.shape_cast %104 : vector<1x256xf32> to vector<256xf32>
    %106 = vector.shape_cast %105 : vector<256xf32> to vector<1x256xf32>
    %107 = vector.broadcast %106 : vector<1x256xf32> to vector<8x256xf32>
    %108 = arith.mulf %71, %107 : vector<8x256xf32>
    %c250_i32_19 = arith.constant 250 : i32
    %109 = tpu.dynamic_rotate %71 by %c250_i32_19 dim 1 : vector<8x256xf32>, i32 -> vector<8x256xf32>
    %110 = vector.extract_strided_slice %2 {offsets = [6, 0], sizes = [1, 256], strides = [1, 1]} : vector<9x256xf32> to vector<1x256xf32>
    %111 = vector.shape_cast %110 : vector<1x256xf32> to vector<256xf32>
    %112 = vector.shape_cast %111 : vector<256xf32> to vector<1x256xf32>
    %113 = vector.broadcast %112 : vector<1x256xf32> to vector<8x256xf32>
    %114 = arith.mulf %109, %113 : vector<8x256xf32>
    %c249_i32_20 = arith.constant 249 : i32
    %115 = tpu.dynamic_rotate %71 by %c249_i32_20 dim 1 : vector<8x256xf32>, i32 -> vector<8x256xf32>
    %116 = vector.extract_strided_slice %2 {offsets = [7, 0], sizes = [1, 256], strides = [1, 1]} : vector<9x256xf32> to vector<1x256xf32>
    %117 = vector.shape_cast %116 : vector<1x256xf32> to vector<256xf32>
    %118 = vector.shape_cast %117 : vector<256xf32> to vector<1x256xf32>
    %119 = vector.broadcast %118 : vector<1x256xf32> to vector<8x256xf32>
    %120 = arith.mulf %115, %119 : vector<8x256xf32>
    %c248_i32_21 = arith.constant 248 : i32
    %121 = tpu.dynamic_rotate %71 by %c248_i32_21 dim 1 : vector<8x256xf32>, i32 -> vector<8x256xf32>
    %122 = vector.extract_strided_slice %2 {offsets = [8, 0], sizes = [1, 256], strides = [1, 1]} : vector<9x256xf32> to vector<1x256xf32>
    %123 = vector.shape_cast %122 : vector<1x256xf32> to vector<256xf32>
    %124 = vector.shape_cast %123 : vector<256xf32> to vector<1x256xf32>
    %125 = vector.broadcast %124 : vector<1x256xf32> to vector<8x256xf32>
    %126 = arith.mulf %121, %125 : vector<8x256xf32>
    %127 = tpu.concatenate %79, %85, %91, %97, %103, %108, %114, %120, %126 in 0 : vector<8x256xf32>, vector<8x256xf32>, vector<8x256xf32>, vector<8x256xf32>, vector<8x256xf32>, vector<8x256xf32>, vector<8x256xf32>, vector<8x256xf32>, vector<8x256xf32> -> vector<72x256xf32>
    %128 = arith.truncf %127 : vector<72x256xf32> to vector<72x256xbf16>
    %c0_22 = arith.constant 0 : index
    %c0_23 = arith.constant 0 : index
    %129 = vector.load %arg5[%c0_22, %c0_23] : memref<8x72xbf16, #tpu.memory_space<vmem>>, vector<8x72xbf16>
    %cst_24 = arith.constant dense<0.000000e+00> : vector<8x256xf32>
    %130 = tpu.matmul %129, %128, %cst_24 {dimension_numbers = #tpu.dot_dimension_numbers<[1], [0], [0], [1], [0, 0, 1, 1], [], []>} : vector<8x72xbf16>, vector<72x256xbf16>, vector<8x256xf32> -> vector<8x256xf32>
    %131 = arith.addf %73, %130 : vector<8x256xf32>
    %c0_25 = arith.constant 0 : index
    %c0_26 = arith.constant 0 : index
    %132 = vector.load %arg9[%c0_25, %c0_26] : memref<16x256xbf16, #tpu.memory_space<vmem>>, vector<16x256xbf16>
    %133 = arith.truncf %131 : vector<8x256xf32> to vector<8x256xbf16>
    %cst_27 = arith.constant dense<0.000000e+00> : vector<8x16xf32>
    %134 = tpu.matmul %133, %132, %cst_27 {dimension_numbers = #tpu.dot_dimension_numbers<[1], [1], [0], [0], [0, 0, 1, 0], [], []>} : vector<8x256xbf16>, vector<16x256xbf16>, vector<8x16xf32> -> vector<8x16xf32>
    %cst_28 = arith.constant dense<0.000000e+00> : vector<16xf32>
    %135 = vector.multi_reduction <add>, %134, %cst_28 [0] : vector<8x16xf32> to vector<16xf32>
    %136 = vector.shape_cast %135 : vector<16xf32> to vector<1x16xf32>
    %cst_29 = arith.constant 7.812500e-03 : f32
    %137 = vector.broadcast %cst_29 : f32 to vector<1x16xf32>
    %138 = arith.mulf %136, %137 : vector<1x16xf32>
    %139 = arith.truncf %138 : vector<1x16xf32> to vector<1x16xbf16>
    %cst_30 = arith.constant dense<0.000000e+00> : vector<1x256xf32>
    %140 = tpu.matmul %139, %132, %cst_30 {dimension_numbers = #tpu.dot_dimension_numbers<[1], [0], [0], [1], [0, 0, 1, 1], [], []>} : vector<1x16xbf16>, vector<16x256xbf16>, vector<1x256xf32> -> vector<1x256xf32>
    %141 = vector.broadcast %140 : vector<1x256xf32> to vector<8x256xf32>
    %142 = arith.subf %131, %141 : vector<8x256xf32>
    %143 = arith.mulf %142, %142 : vector<8x256xf32>
    %144 = arith.truncf %143 : vector<8x256xf32> to vector<8x256xbf16>
    %cst_31 = arith.constant dense<0.000000e+00> : vector<8x16xf32>
    %145 = tpu.matmul %144, %132, %cst_31 {dimension_numbers = #tpu.dot_dimension_numbers<[1], [1], [0], [0], [0, 0, 1, 0], [], []>} : vector<8x256xbf16>, vector<16x256xbf16>, vector<8x16xf32> -> vector<8x16xf32>
    %cst_32 = arith.constant dense<0.000000e+00> : vector<16xf32>
    %146 = vector.multi_reduction <add>, %145, %cst_32 [0] : vector<8x16xf32> to vector<16xf32>
    %147 = vector.shape_cast %146 : vector<16xf32> to vector<1x16xf32>
    %cst_33 = arith.constant 7.812500e-03 : f32
    %148 = vector.broadcast %cst_33 : f32 to vector<1x16xf32>
    %149 = arith.mulf %147, %148 : vector<1x16xf32>
    %150 = arith.truncf %149 : vector<1x16xf32> to vector<1x16xbf16>
    %cst_34 = arith.constant dense<0.000000e+00> : vector<1x256xf32>
    %151 = tpu.matmul %150, %132, %cst_34 {dimension_numbers = #tpu.dot_dimension_numbers<[1], [0], [0], [1], [0, 0, 1, 1], [], []>} : vector<1x16xbf16>, vector<16x256xbf16>, vector<1x256xf32> -> vector<1x256xf32>
    %c0_35 = arith.constant 0 : index
    %c0_36 = arith.constant 0 : index
    %152 = vector.load %arg8[%c0_35, %c0_36] : memref<16x256xf32, #tpu.memory_space<vmem>>, vector<16x256xf32>
    %cst_37 = arith.constant 9.99999974E-6 : f32
    %153 = vector.broadcast %cst_37 : f32 to vector<1x256xf32>
    %154 = arith.addf %151, %153 : vector<1x256xf32>
    %155 = math.rsqrt %154 : vector<1x256xf32>
    %156 = vector.broadcast %155 : vector<1x256xf32> to vector<8x256xf32>
    %157 = arith.mulf %142, %156 : vector<8x256xf32>
    %158 = vector.extract_strided_slice %152 {offsets = [0, 0], sizes = [8, 256], strides = [1, 1]} : vector<16x256xf32> to vector<8x256xf32>
    %159 = arith.mulf %157, %158 : vector<8x256xf32>
    %160 = vector.extract_strided_slice %152 {offsets = [8, 0], sizes = [8, 256], strides = [1, 1]} : vector<16x256xf32> to vector<8x256xf32>
    %161 = arith.addf %159, %160 : vector<8x256xf32>
    %c0_38 = arith.constant 0 : index
    %c0_39 = arith.constant 0 : index
    %162 = vector.load %arg10[%c0_38, %c0_39] : memref<16x8xbf16, #tpu.memory_space<vmem>>, vector<16x8xbf16>
    %163 = arith.truncf %161 : vector<8x256xf32> to vector<8x256xbf16>
    %cst_40 = arith.constant dense<0.000000e+00> : vector<16x256xf32>
    %164 = tpu.matmul %162, %163, %cst_40 {dimension_numbers = #tpu.dot_dimension_numbers<[1], [0], [0], [1], [0, 0, 1, 1], [], []>} : vector<16x8xbf16>, vector<8x256xbf16>, vector<16x256xf32> -> vector<16x256xf32>
    %cst_41 = arith.constant 0.000000e+00 : f32
    %165 = vector.broadcast %cst_41 : f32 to vector<8x256xf32>
    %166 = vector.extract_strided_slice %164 {offsets = [0, 0], sizes = [8, 256], strides = [1, 1]} : vector<16x256xf32> to vector<8x256xf32>
    %167 = arith.truncf %166 : vector<8x256xf32> to vector<8x256xbf16>
    %c0_42 = arith.constant 0 : index
    %c0_43 = arith.constant 0 : index
    %c0_44 = arith.constant 0 : index
    %168 = vector.load %arg11[%c0_42, %c0_43, %c0_44] : memref<2x256x256xbf16, #tpu.memory_space<vmem>>, vector<1x256x256xbf16>
    %169 = vector.shape_cast %168 : vector<1x256x256xbf16> to vector<256x256xbf16>
    %cst_45 = arith.constant dense<0.000000e+00> : vector<8x256xf32>
    %170 = tpu.matmul %167, %169, %cst_45 {dimension_numbers = #tpu.dot_dimension_numbers<[1], [0], [0], [1], [0, 0, 1, 1], [], []>} : vector<8x256xbf16>, vector<256x256xbf16>, vector<8x256xf32> -> vector<8x256xf32>
    %171 = arith.addf %165, %170 : vector<8x256xf32>
    %172 = vector.extract_strided_slice %164 {offsets = [8, 0], sizes = [8, 256], strides = [1, 1]} : vector<16x256xf32> to vector<8x256xf32>
    %173 = arith.truncf %172 : vector<8x256xf32> to vector<8x256xbf16>
    %c1 = arith.constant 1 : index
    %c0_46 = arith.constant 0 : index
    %c0_47 = arith.constant 0 : index
    %174 = vector.load %arg11[%c1, %c0_46, %c0_47] : memref<2x256x256xbf16, #tpu.memory_space<vmem>>, vector<1x256x256xbf16>
    %175 = vector.shape_cast %174 : vector<1x256x256xbf16> to vector<256x256xbf16>
    %cst_48 = arith.constant dense<0.000000e+00> : vector<8x256xf32>
    %176 = tpu.matmul %173, %175, %cst_48 {dimension_numbers = #tpu.dot_dimension_numbers<[1], [0], [0], [1], [0, 0, 1, 1], [], []>} : vector<8x256xbf16>, vector<256x256xbf16>, vector<8x256xf32> -> vector<8x256xf32>
    %177 = arith.addf %171, %176 : vector<8x256xf32>
    %178 = vector.broadcast %8 : vector<8x1xf32> to vector<8x256xf32>
    %179 = arith.addf %177, %178 : vector<8x256xf32>
    %180 = arith.addf %179, %161 : vector<8x256xf32>
    %cst_49 = arith.constant 0.000000e+00 : f32
    %181 = vector.broadcast %cst_49 : f32 to vector<8x256xf32>
    %182 = arith.maximumf %180, %181 : vector<8x256xf32>
    %183 = vector.extract_strided_slice %5 {offsets = [8, 0], sizes = [8, 256], strides = [1, 1]} : vector<16x256xf32> to vector<8x256xf32>
    %184 = arith.addf %182, %183 : vector<8x256xf32>
    %185 = vector.broadcast %9 : vector<8x1xf32> to vector<8x256xf32>
    %186 = arith.addf %184, %185 : vector<8x256xf32>
    %c0_50 = arith.constant 0 : index
    %c0_51 = arith.constant 0 : index
    %c0_52 = arith.constant 0 : index
    %187 = vector.load %arg12[%c0_50, %c0_51, %c0_52] : memref<1x8x256xf32, #tpu.memory_space<vmem>>, vector<1x8x256xf32>
    %188 = vector.shape_cast %187 : vector<1x8x256xf32> to vector<8x256xf32>
    %189 = vector.shape_cast %186 : vector<8x256xf32> to vector<1x8x256xf32>
    tpu.vector_store %arg12[%c0_50, %c0_51, %c0_52], %189 {strides = array<i32>} : memref<1x8x256xf32, #tpu.memory_space<vmem>>, vector<1x8x256xf32>,
    return
  }
  func.func @transform_0(%arg0: i32) -> (i32, i32, i32) {
    %c0_i32 = arith.constant 0 : i32
    %c0_i32_0 = arith.constant 0 : i32
    %c0_i32_1 = arith.constant 0 : i32
    return %arg0, %c0_i32, %c0_i32_0 : i32, i32, i32
  }
  func.func @transform_1(%arg0: i32) -> (i32, i32, i32) {
    %c0_i32 = arith.constant 0 : i32
    %c0_i32_0 = arith.constant 0 : i32
    %c0_i32_1 = arith.constant 0 : i32
    return %arg0, %c0_i32, %c0_i32_0 : i32, i32, i32
  }
  func.func @transform_2(%arg0: i32) -> (i32, i32) {
    %c0_i32 = arith.constant 0 : i32
    %c0_i32_0 = arith.constant 0 : i32
    %c0_i32_1 = arith.constant 0 : i32
    return %c0_i32, %c0_i32_0 : i32, i32
  }
  func.func @transform_3(%arg0: i32) -> (i32, i32) {
    %c0_i32 = arith.constant 0 : i32
    %c0_i32_0 = arith.constant 0 : i32
    %c0_i32_1 = arith.constant 0 : i32
    return %c0_i32, %c0_i32_0 : i32, i32
  }
  func.func @transform_4(%arg0: i32) -> (i32, i32) {
    %c0_i32 = arith.constant 0 : i32
    %c0_i32_0 = arith.constant 0 : i32
    %c0_i32_1 = arith.constant 0 : i32
    return %c0_i32, %c0_i32_0 : i32, i32
  }
  func.func @transform_5(%arg0: i32) -> (i32, i32) {
    %c0_i32 = arith.constant 0 : i32
    %c0_i32_0 = arith.constant 0 : i32
    %c0_i32_1 = arith.constant 0 : i32
    return %c0_i32, %c0_i32_0 : i32, i32
  }
  func.func @transform_6(%arg0: i32) -> (i32, i32) {
    %c0_i32 = arith.constant 0 : i32
    %c0_i32_0 = arith.constant 0 : i32
    %c0_i32_1 = arith.constant 0 : i32
    return %c0_i32, %c0_i32_0 : i32, i32
  }
  func.func @transform_7(%arg0: i32) -> (i32, i32) {
    %c0_i32 = arith.constant 0 : i32
    %c0_i32_0 = arith.constant 0 : i32
    %c0_i32_1 = arith.constant 0 : i32
    return %c0_i32, %c0_i32_0 : i32, i32
  }
  func.func @transform_8(%arg0: i32) -> (i32, i32) {
    %c0_i32 = arith.constant 0 : i32
    %c0_i32_0 = arith.constant 0 : i32
    %c0_i32_1 = arith.constant 0 : i32
    return %c0_i32, %c0_i32_0 : i32, i32
  }
  func.func @transform_9(%arg0: i32) -> (i32, i32) {
    %c0_i32 = arith.constant 0 : i32
    %c0_i32_0 = arith.constant 0 : i32
    %c0_i32_1 = arith.constant 0 : i32
    return %c0_i32, %c0_i32_0 : i32, i32
  }
  func.func @transform_10(%arg0: i32) -> (i32, i32, i32) {
    %c0_i32 = arith.constant 0 : i32
    %c0_i32_0 = arith.constant 0 : i32
    %c0_i32_1 = arith.constant 0 : i32
    %c0_i32_2 = arith.constant 0 : i32
    return %c0_i32, %c0_i32_0, %c0_i32_1 : i32, i32, i32
  }
  func.func @transform_11(%arg0: i32) -> (i32, i32, i32) {
    %c0_i32 = arith.constant 0 : i32
    %c0_i32_0 = arith.constant 0 : i32
    %c0_i32_1 = arith.constant 0 : i32
    return %arg0, %c0_i32, %c0_i32_0 : i32, i32, i32
  }
}

</mosaic_0001>

<llo_original>
// kernel: up_block_forward.1
$region0: #{up_block_forward.1}
  #allocation0 [shape = 'u32[]', space=smem, size = 0x4, offset = 0x4, fixed_abs, tag = 'smem constant byte address 0x4 - core index']
  #allocation1 [shape = 'u32[144,128]{1,0:T(1,128)}', space=vmem, size = 0x12000, scoped, tag = 'internal scratch']
  %s0 = inlined_call_operand.vmem [shape: f32[1,16,256], index: 0, kind: input, shape index: {}]
  %s1 = inlined_call_operand.vmem [shape: f32[1,8,256], index: 1, kind: input, shape index: {}]
  %s2 = inlined_call_operand.vmem [shape: f32[9,256], index: 2, kind: input, shape index: {}]
  %s3 = inlined_call_operand.vmem [shape: bf16[8,144], index: 3, kind: input, shape index: {}]
  %s4 = inlined_call_operand.vmem [shape: bf16[8,72], index: 4, kind: input, shape index: {}]
  %s5 = inlined_call_operand.vmem [shape: bf16[16,16], index: 5, kind: input, shape index: {}]
  %s6 = inlined_call_operand.vmem [shape: f32[8,3], index: 6, kind: input, shape index: {}]
  %s7 = inlined_call_operand.vmem [shape: f32[16,256], index: 7, kind: input, shape index: {}]
  %s8 = inlined_call_operand.vmem [shape: bf16[16,256], index: 8, kind: input, shape index: {}]
  %s9 = inlined_call_operand.vmem [shape: bf16[16,8], index: 9, kind: input, shape index: {}]
  %s10 = inlined_call_operand.vmem [shape: bf16[2,256,256], index: 10, kind: input, shape index: {}]
  %s11 = inlined_call_operand.vmem [shape: f32[1,8,256], index: 11, kind: output, shape index: {}]
  %s12 = sld [smem:[#allocation0]]
  $region54: #{up_block_forward.1} parent=0
    _
  %s14 = ssub.s32 1, %s12
  %s15 = scalar_select 0, %s14, %s12
  // Predicated region
  $region2: #{up_block_forward.1} parent=0 // pred_check
    _
  $region3: #{up_block_forward.1} parent=0 // pred_check_branch
    %17 = sbr.rel (0) target = $region5
  $region4: #{up_block_forward.1} parent=0 // pred_region
    _
  $region5: #{up_block_forward.1} parent=0 // pred_fallthru
    _
  // Predicated region
  $region6: #{up_block_forward.1} parent=0 // pred_check
    _
  $region7: #{up_block_forward.1} parent=0 // pred_check_branch
    %19 = sbr.rel (0) target = $region9
  $region8: #{up_block_forward.1} parent=0 // pred_region
    _
  $region9: #{up_block_forward.1} parent=0 // pred_fallthru
    _
  // Predicated region
  $region10: #{up_block_forward.1} parent=0 // pred_check
    _
  $region11: #{up_block_forward.1} parent=0 // pred_check_branch
    %21 = sbr.rel (0) target = $region13
  $region12: #{up_block_forward.1} parent=0 // pred_region
    _
  $region13: #{up_block_forward.1} parent=0 // pred_fallthru
    _
  // Predicated region
  $region14: #{up_block_forward.1} parent=0 // pred_check
    _
  $region15: #{up_block_forward.1} parent=0 // pred_check_branch
    %23 = sbr.rel (0) target = $region17
  $region16: #{up_block_forward.1} parent=0 // pred_region
    _
  $region17: #{up_block_forward.1} parent=0 // pred_fallthru
    _
  // Predicated region
  $region18: #{up_block_forward.1} parent=0 // pred_check
    _
  $region19: #{up_block_forward.1} parent=0 // pred_check_branch
    %25 = sbr.rel (0) target = $region21
  $region20: #{up_block_forward.1} parent=0 // pred_region
    _
  $region21: #{up_block_forward.1} parent=0 // pred_fallthru
    _
  // Predicated region
  $region22: #{up_block_forward.1} parent=0 // pred_check
    _
  $region23: #{up_block_forward.1} parent=0 // pred_check_branch
    %27 = sbr.rel (0) target = $region25
  $region24: #{up_block_forward.1} parent=0 // pred_region
    _
  $region25: #{up_block_forward.1} parent=0 // pred_fallthru
    _
  // Predicated region
  $region26: #{up_block_forward.1} parent=0 // pred_check
    _
  $region27: #{up_block_forward.1} parent=0 // pred_check_branch
    %29 = sbr.rel (0) target = $region29
  $region28: #{up_block_forward.1} parent=0 // pred_region
    _
  $region29: #{up_block_forward.1} parent=0 // pred_fallthru
    _
  // Predicated region
  $region30: #{up_block_forward.1} parent=0 // pred_check
    _
  $region31: #{up_block_forward.1} parent=0 // pred_check_branch
    %31 = sbr.rel (0) target = $region33
  $region32: #{up_block_forward.1} parent=0 // pred_region
    _
  $region33: #{up_block_forward.1} parent=0 // pred_fallthru
    _
  // Predicated region
  $region34: #{up_block_forward.1} parent=0 // pred_check
    _
  $region35: #{up_block_forward.1} parent=0 // pred_check_branch
    %33 = sbr.rel (0) target = $region37
  $region36: #{up_block_forward.1} parent=0 // pred_region
    _
  $region37: #{up_block_forward.1} parent=0 // pred_fallthru
    _
  // Predicated region
  $region38: #{up_block_forward.1} parent=0 // pred_check
    _
  $region39: #{up_block_forward.1} parent=0 // pred_check_branch
    %35 = sbr.rel (0) target = $region41
  $region40: #{up_block_forward.1} parent=0 // pred_region
    _
  $region41: #{up_block_forward.1} parent=0 // pred_fallthru
    _
  // Predicated region
  $region42: #{up_block_forward.1} parent=0 // pred_check
    _
  $region43: #{up_block_forward.1} parent=0 // pred_check_branch
    %37 = sbr.rel (0) target = $region45
  $region44: #{up_block_forward.1} parent=0 // pred_region
    _
  $region45: #{up_block_forward.1} parent=0 // pred_fallthru
    _
  %v39 = vld [vmem:[%s0] sm:$0xff]
  %v40 = vld [vmem:[%s0 + $0x8] sm:$0xff]
  %v41 = vld [vmem:[%s0 + $0x10] sm:$0xff]
  %v42 = vld [vmem:[%s0 + $0x18] sm:$0xff]
  %v43 = vld [vmem:[%s2] sm:$0xff]
  %v44 = vld [vmem:[%s2 + $0x8] sm:$0xff]
  %v45 = vld [vmem:[%s2 + $0x10] sm:$0x1]
  %v46 = vld [vmem:[%s2 + $0x18] sm:$0x1]
  %v47 = vld [vmem:[%s5] sm:$0xf]
  %v48 = vld [vmem:[%s5 + $0x4] sm:$0xf]
  %v49 = vpack.c.bf16 %v41, %v39
  %v50 = vpack.c.bf16 %v42, %v40
  %v53 = vunpack.c.l.b16 %v47
  %v54 = vunpack.c.l.b16 %v48
  %v55 = vpack.c.b16 %v54, %v53
  %vm56 = vcmask 130048
  %v58 = vsel %vm56, %v55, 0
  %60 = vmatprep.subr.bf16.mxu0 0
  %61 = vmatpush1.bf16.msra.mxu0 0
  %62 = vmatprep.subr.bf16.mxu0 0
  %63 = vmatpush1.bf16.msra.mxu0 0
  %64 = vmatprep.subr.bf16.mxu0 0
  %65 = vmatpush1.bf16.msra.mxu0 0
  %66 = vmatprep.subr.bf16.mxu0 0
  %67 = vmatpush1.bf16.msra.mxu0 0
  %68 = vmatprep.subr.bf16.mxu0 0
  %69 = vmatpush1.bf16.msra.mxu0 0
  %70 = vmatprep.subr.bf16.mxu0 0
  %71 = vmatpush1.bf16.msra.mxu0 0
  %72 = vmatprep.subr.bf16.mxu0 0
  %73 = vmatpush1.bf16.msra.mxu0 0
  %74 = vmatprep.subr.bf16.mxu0 %v50
  %75 = vmatpush1.bf16.msra.mxu0 %v49
  %76 = vmatprep.subr.bf16.mxu0 0
  %77 = vmatpush2.bf16.msra.mxu0 0
  %78 = vmatprep.subr.bf16.mxu0 0
  %79 = vmatpush2.bf16.msra.mxu0 0
  %80 = vmatprep.subr.bf16.mxu0 0
  %81 = vmatpush2.bf16.msra.mxu0 0
  %82 = vmatprep.subr.bf16.mxu0 0
  %83 = vmatpush2.bf16.msra.mxu0 0
  %84 = vmatprep.subr.bf16.mxu0 0
  %85 = vmatpush2.bf16.msra.mxu0 0
  %86 = vmatprep.subr.bf16.mxu0 0
  %87 = vmatpush2.bf16.msra.mxu0 0
  %88 = vmatprep.subr.bf16.mxu0 0
  %89 = vmatpush2.bf16.msra.mxu0 0
  %90 = vmatprep.subr.bf16.mxu0 0
  %91 = vmatpush2.bf16.msra.mxu0 0
  %92 = vmatprep.mubr.bf16.mxu0 0
  %93 = vmatmul.mubr.bf16.gmra.mxu0 %v58
  %v94 = vpop.f32.mrf.mxu0
  %v95 = vadd.f32 0.0, %v94
  %v96 = vpop.f32.mrf.mxu0
  %v97 = vadd.f32 0.0, %v96
  %v98 = vpop.f32.mrf.mxu0
  %v99 = vadd.f32 0.0, %v98
  %v100 = vpop.f32.mrf.mxu0
  %v101 = vadd.f32 0.0, %v100
  %102 = vdwg.mxu0
  %v103 = vld [vmem:[%s6] sm:$0xff]
  %104 = vrot.lane.b32.xlu0 %v39, 10
  %v105 = vpop.permute.xlu0 %104
  %106 = vrot.lane.b32.xlu0 %v41, 10
  %v107 = vpop.permute.xlu0 %106
  %108 = vrot.lane.b32.xlu0 %v40, 10
  %v109 = vpop.permute.xlu0 %108
  %110 = vrot.lane.b32.xlu0 %v42, 10
  %v111 = vpop.permute.xlu0 %110
  %v112 = vlaneseq
  %v113 = vand.u32 %v112, 127
  %vm114 = vcmp.lt.s32.totalorder %v113, 10
  %v115 = vsel %vm114, %v105, %v109
  %v116 = vsel %vm114, %v107, %v111
  %v117 = vsel %vm114, %v109, %v105
  %v118 = vsel %vm114, %v111, %v107
  %v119 = vlaneseq
  %v120 = vshrl.u32 %v119, 7
  %v121 = vsub.s32 0, %v120
  %v122 = vrot.slane %v43, %v121
  %v123 = vlaneseq
  %v124 = vshrl.u32 %v123, 7
  %v125 = vsub.s32 0, %v124
  %v126 = vrot.slane %v44, %v125
  %v127 = vmul.f32 %v117, %v122
  %v128 = vmul.f32 %v115, %v126
  %v129 = vmul.f32 %v118, %v122
  %v130 = vmul.f32 %v116, %v126
  %131 = vrot.lane.b32.xlu0 %v39, 9
  %v132 = vpop.permute.xlu0 %131
  %133 = vrot.lane.b32.xlu0 %v41, 9
  %v134 = vpop.permute.xlu0 %133
  %135 = vrot.lane.b32.xlu0 %v40, 9
  %v136 = vpop.permute.xlu0 %135
  %137 = vrot.lane.b32.xlu0 %v42, 9
  %v138 = vpop.permute.xlu0 %137
  %vm139 = vcmp.lt.s32.totalorder %v113, 9
  %v140 = vsel %vm139, %v132, %v136
  %v141 = vsel %vm139, %v134, %v138
  %v142 = vsel %vm139, %v136, %v132
  %v143 = vsel %vm139, %v138, %v134
  %v144 = vlaneseq
  %v145 = vshrl.u32 %v144, 7
  %v146 = vsub.s32 1, %v145
  %v147 = vrot.slane %v43, %v146
  %v148 = vlaneseq
  %v149 = vshrl.u32 %v148, 7
  %v150 = vsub.s32 1, %v149
  %v151 = vrot.slane %v44, %v150
  %v152 = vmul.f32 %v142, %v147
  %v153 = vmul.f32 %v140, %v151
  %v154 = vmul.f32 %v143, %v147
  %v155 = vmul.f32 %v141, %v151
  %156 = vrot.lane.b32.xlu0 %v39, 8
  %v157 = vpop.permute.xlu0 %156
  %158 = vrot.lane.b32.xlu0 %v41, 8
  %v159 = vpop.permute.xlu0 %158
  %160 = vrot.lane.b32.xlu0 %v40, 8
  %v161 = vpop.permute.xlu0 %160
  %162 = vrot.lane.b32.xlu0 %v42, 8
  %v163 = vpop.permute.xlu0 %162
  %vm164 = vcmp.lt.s32.totalorder %v113, 8
  %v165 = vsel %vm164, %v157, %v161
  %v166 = vsel %vm164, %v159, %v163
  %v167 = vsel %vm164, %v161, %v157
  %v168 = vsel %vm164, %v163, %v159
  %v169 = vlaneseq
  %v170 = vshrl.u32 %v169, 7
  %v171 = vsub.s32 2, %v170
  %v172 = vrot.slane %v43, %v171
  %v173 = vlaneseq
  %v174 = vshrl.u32 %v173, 7
  %v175 = vsub.s32 2, %v174
  %v176 = vrot.slane %v44, %v175
  %v177 = vmul.f32 %v167, %v172
  %v178 = vmul.f32 %v165, %v176
  %v179 = vmul.f32 %v168, %v172
  %v180 = vmul.f32 %v166, %v176
  %181 = vrot.lane.b32.xlu0 %v39, 2
  %v182 = vpop.permute.xlu0 %181
  %183 = vrot.lane.b32.xlu0 %v41, 2
  %v184 = vpop.permute.xlu0 %183
  %185 = vrot.lane.b32.xlu0 %v40, 2
  %v186 = vpop.permute.xlu0 %185
  %187 = vrot.lane.b32.xlu0 %v42, 2
  %v188 = vpop.permute.xlu0 %187
  %vm189 = vcmp.lt.s32.totalorder %v113, 2
  %v190 = vsel %vm189, %v182, %v186
  %v191 = vsel %vm189, %v184, %v188
  %v192 = vsel %vm189, %v186, %v182
  %v193 = vsel %vm189, %v188, %v184
  %v194 = vlaneseq
  %v195 = vshrl.u32 %v194, 7
  %v196 = vsub.s32 3, %v195
  %v197 = vrot.slane %v43, %v196
  %v198 = vlaneseq
  %v199 = vshrl.u32 %v198, 7
  %v200 = vsub.s32 3, %v199
  %v201 = vrot.slane %v44, %v200
  %v202 = vmul.f32 %v192, %v197
  %v203 = vmul.f32 %v190, %v201
  %v204 = vmul.f32 %v193, %v197
  %v205 = vmul.f32 %v191, %v201
  %206 = vrot.lane.b32.xlu0 %v39, 1
  %v207 = vpop.permute.xlu0 %206
  %208 = vrot.lane.b32.xlu0 %v41, 1
  %v209 = vpop.permute.xlu0 %208
  %210 = vrot.lane.b32.xlu0 %v40, 1
  %v211 = vpop.permute.xlu0 %210
  %212 = vrot.lane.b32.xlu0 %v42, 1
  %v213 = vpop.permute.xlu0 %212
  %vm214 = vcmp.lt.s32.totalorder %v113, 1
  %v215 = vsel %vm214, %v207, %v211
  %v216 = vsel %vm214, %v209, %v213
  %v217 = vsel %vm214, %v211, %v207
  %v218 = vsel %vm214, %v213, %v209
  %v219 = vlaneseq
  %v220 = vshrl.u32 %v219, 7
  %v221 = vsub.s32 4, %v220
  %v222 = vrot.slane %v43, %v221
  %v223 = vlaneseq
  %v224 = vshrl.u32 %v223, 7
  %v225 = vsub.s32 4, %v224
  %v226 = vrot.slane %v44, %v225
  %v227 = vmul.f32 %v217, %v222
  %v228 = vmul.f32 %v215, %v226
  %v229 = vmul.f32 %v218, %v222
  %v230 = vmul.f32 %v216, %v226
  %v231 = vlaneseq
  %v232 = vshrl.u32 %v231, 7
  %v233 = vsub.s32 5, %v232
  %v234 = vrot.slane %v43, %v233
  %v235 = vlaneseq
  %v236 = vshrl.u32 %v235, 7
  %v237 = vsub.s32 5, %v236
  %v238 = vrot.slane %v44, %v237
  %v239 = vmul.f32 %v39, %v234
  %v240 = vmul.f32 %v40, %v238
  %v241 = vmul.f32 %v41, %v234
  %v242 = vmul.f32 %v42, %v238
  %243 = vrot.lane.b32.xlu0 %v39, 122
  %v244 = vpop.permute.xlu0 %243
  %245 = vrot.lane.b32.xlu0 %v41, 122
  %v246 = vpop.permute.xlu0 %245
  %247 = vrot.lane.b32.xlu0 %v40, 122
  %v248 = vpop.permute.xlu0 %247
  %249 = vrot.lane.b32.xlu0 %v42, 122
  %v250 = vpop.permute.xlu0 %249
  %vm251 = vcmp.lt.s32.totalorder %v113, 122
  %v252 = vsel %vm251, %v244, %v248
  %v253 = vsel %vm251, %v246, %v250
  %v254 = vsel %vm251, %v248, %v244
  %v255 = vsel %vm251, %v250, %v246
  %v256 = vlaneseq
  %v257 = vshrl.u32 %v256, 7
  %v258 = vsub.s32 6, %v257
  %v259 = vrot.slane %v43, %v258
  %v260 = vlaneseq
  %v261 = vshrl.u32 %v260, 7
  %v262 = vsub.s32 6, %v261
  %v263 = vrot.slane %v44, %v262
  %v264 = vmul.f32 %v252, %v259
  %v265 = vmul.f32 %v254, %v263
  %v266 = vmul.f32 %v253, %v259
  %v267 = vmul.f32 %v255, %v263
  %268 = vrot.lane.b32.xlu0 %v39, 121
  %v269 = vpop.permute.xlu0 %268
  %270 = vrot.lane.b32.xlu0 %v41, 121
  %v271 = vpop.permute.xlu0 %270
  %272 = vrot.lane.b32.xlu0 %v40, 121
  %v273 = vpop.permute.xlu0 %272
  %274 = vrot.lane.b32.xlu0 %v42, 121
  %v275 = vpop.permute.xlu0 %274
  %vm276 = vcmp.lt.s32.totalorder %v113, 121
  %v277 = vsel %vm276, %v269, %v273
  %v278 = vsel %vm276, %v271, %v275
  %v279 = vsel %vm276, %v273, %v269
  %v280 = vsel %vm276, %v275, %v271
  %v281 = vlaneseq
  %v282 = vshrl.u32 %v281, 7
  %v283 = vsub.s32 7, %v282
  %v284 = vrot.slane %v43, %v283
  %v285 = vlaneseq
  %v286 = vshrl.u32 %v285, 7
  %v287 = vsub.s32 7, %v286
  %v288 = vrot.slane %v44, %v287
  %v289 = vmul.f32 %v277, %v284
  %v290 = vmul.f32 %v279, %v288
  %v291 = vmul.f32 %v278, %v284
  %v292 = vmul.f32 %v280, %v288
  %293 = vrot.lane.b32.xlu0 %v39, 120
  %v294 = vpop.permute.xlu0 %293
  %295 = vrot.lane.b32.xlu0 %v41, 120
  %v296 = vpop.permute.xlu0 %295
  %297 = vrot.lane.b32.xlu0 %v40, 120
  %v298 = vpop.permute.xlu0 %297
  %299 = vrot.lane.b32.xlu0 %v42, 120
  %v300 = vpop.permute.xlu0 %299
  %vm301 = vcmp.lt.s32.totalorder %v113, 120
  %v302 = vsel %vm301, %v294, %v298
  %v303 = vsel %vm301, %v296, %v300
  %v304 = vsel %vm301, %v298, %v294
  %v305 = vsel %vm301, %v300, %v296
  %v306 = vlaneseq
  %v307 = vshrl.u32 %v306, 7
  %v308 = vsub.s32 0, %v307
  %v309 = vrot.slane %v45, %v308
  %v310 = vlaneseq
  %v311 = vshrl.u32 %v310, 7
  %v312 = vsub.s32 0, %v311
  %v313 = vrot.slane %v46, %v312
  %v314 = vmul.f32 %v302, %v309
  %v315 = vmul.f32 %v304, %v313
  %v316 = vmul.f32 %v303, %v309
  %v317 = vmul.f32 %v305, %v313
  %v318 = vpack.c.bf16 %v129, %v127
  %v319 = vpack.c.bf16 %v130, %v128
  %v320 = vpack.c.bf16 %v154, %v152
  %v321 = vpack.c.bf16 %v155, %v153
  %v322 = vpack.c.bf16 %v179, %v177
  %v323 = vpack.c.bf16 %v180, %v178
  %v324 = vpack.c.bf16 %v204, %v202
  %v325 = vpack.c.bf16 %v205, %v203
  %v326 = vpack.c.bf16 %v229, %v227
  %v327 = vpack.c.bf16 %v230, %v228
  %v328 = vpack.c.bf16 %v241, %v239
  %v329 = vpack.c.bf16 %v242, %v240
  %v330 = vpack.c.bf16 %v266, %v264
  %v331 = vpack.c.bf16 %v267, %v265
  %v332 = vpack.c.bf16 %v291, %v289
  %v333 = vpack.c.bf16 %v292, %v290
  %v334 = vpack.c.bf16 %v316, %v314
  %v335 = vpack.c.bf16 %v317, %v315
  %v336 = vld [vmem:[%s3] sm:$0xff]
  %v338 = vunpack.c.l.b16 %v336
  %v339 = vunpack.c.h.b16 %v336
  %v340 = vpack.c.b16 %v338, %v338
  %v341 = vpack.c.b16 %v339, %v339
  %v344 = vsel %vm56, %v341, 0
  %346 = vmatprep.subr.bf16.mxu0 %v333
  %347 = vmatpush1.bf16.msra.mxu0 %v332
  %348 = vmatprep.subr.bf16.mxu0 %v331
  %349 = vmatpush1.bf16.msra.mxu0 %v330
  %350 = vmatprep.subr.bf16.mxu0 %v329
  %351 = vmatpush1.bf16.msra.mxu0 %v328
  %352 = vmatprep.subr.bf16.mxu0 %v327
  %353 = vmatpush1.bf16.msra.mxu0 %v326
  %354 = vmatprep.subr.bf16.mxu0 %v325
  %355 = vmatpush1.bf16.msra.mxu0 %v324
  %356 = vmatprep.subr.bf16.mxu0 %v323
  %357 = vmatpush1.bf16.msra.mxu0 %v322
  %358 = vmatprep.subr.bf16.mxu0 %v321
  %359 = vmatpush1.bf16.msra.mxu0 %v320
  %360 = vmatprep.subr.bf16.mxu0 %v319
  %361 = vmatpush1.bf16.msra.mxu0 %v318
  %362 = vmatprep.subr.bf16.mxu0 0
  %363 = vmatpush2.bf16.msra.mxu0 0
  %364 = vmatprep.subr.bf16.mxu0 0
  %365 = vmatpush2.bf16.msra.mxu0 0
  %366 = vmatprep.subr.bf16.mxu0 0
  %367 = vmatpush2.bf16.msra.mxu0 0
  %368 = vmatprep.subr.bf16.mxu0 0
  %369 = vmatpush2.bf16.msra.mxu0 0
  %370 = vmatprep.subr.bf16.mxu0 0
  %371 = vmatpush2.bf16.msra.mxu0 0
  %372 = vmatprep.subr.bf16.mxu0 0
  %373 = vmatpush2.bf16.msra.mxu0 0
  %374 = vmatprep.subr.bf16.mxu0 0
  %375 = vmatpush2.bf16.msra.mxu0 0
  %376 = vmatprep.subr.bf16.mxu0 %v335
  %377 = vmatpush2.bf16.msra.mxu0 %v334
  %378 = vmatprep.mubr.bf16.mxu0 %v344
  %379 = vmatmul.mubr.bf16.gmra.mxu0 %v340
  %v380 = vpop.f32.mrf.mxu0
  %v381 = vadd.f32 %v95, %v380
  %v382 = vpop.f32.mrf.mxu0
  %v383 = vadd.f32 %v97, %v382
  %v384 = vpop.f32.mrf.mxu0
  %v385 = vpop.f32.mrf.mxu0
  %386 = vdwg.mxu0
  %v387 = vld [vmem:[%s1] sm:$0xff]
  %v388 = vld [vmem:[%s1 + $0x8] sm:$0xff]
  %v389 = vadd.f32 %v381, %v387
  %v390 = vadd.f32 %v383, %v388
  %392 = vset.pattern.permute.xlu0 0
  %393 = vperm.xlu0 %392, %v103
  %v394 = vpop.permute.xlu0 %393
  %v396 = vadd.f32 %v389, %v394
  %v397 = vadd.f32 %v390, %v394
  %398 = vrot.lane.b32.xlu0 %v389, 10
  %v399 = vpop.permute.xlu0 %398
  %400 = vrot.lane.b32.xlu0 %v390, 10
  %v401 = vpop.permute.xlu0 %400
  %v402 = vsel %vm114, %v399, %v401
  %v403 = vsel %vm114, %v401, %v399
  %v404 = vmul.f32 %v403, %v122
  %v405 = vmul.f32 %v402, %v126
  %406 = vrot.lane.b32.xlu0 %v389, 9
  %v407 = vpop.permute.xlu0 %406
  %408 = vrot.lane.b32.xlu0 %v390, 9
  %v409 = vpop.permute.xlu0 %408
  %v410 = vsel %vm139, %v407, %v409
  %v411 = vsel %vm139, %v409, %v407
  %v412 = vmul.f32 %v411, %v147
  %v413 = vmul.f32 %v410, %v151
  %414 = vrot.lane.b32.xlu0 %v389, 8
  %v415 = vpop.permute.xlu0 %414
  %416 = vrot.lane.b32.xlu0 %v390, 8
  %v417 = vpop.permute.xlu0 %416
  %v418 = vsel %vm164, %v415, %v417
  %v419 = vsel %vm164, %v417, %v415
  %v420 = vmul.f32 %v419, %v172
  %v421 = vmul.f32 %v418, %v176
  %422 = vrot.lane.b32.xlu0 %v389, 2
  %v423 = vpop.permute.xlu0 %422
  %424 = vrot.lane.b32.xlu0 %v390, 2
  %v425 = vpop.permute.xlu0 %424
  %v426 = vsel %vm189, %v423, %v425
  %v427 = vsel %vm189, %v425, %v423
  %v428 = vmul.f32 %v427, %v197
  %v429 = vmul.f32 %v426, %v201
  %430 = vrot.lane.b32.xlu0 %v389, 1
  %v431 = vpop.permute.xlu0 %430
  %432 = vrot.lane.b32.xlu0 %v390, 1
  %v433 = vpop.permute.xlu0 %432
  %v434 = vsel %vm214, %v431, %v433
  %v435 = vsel %vm214, %v433, %v431
  %v436 = vmul.f32 %v435, %v222
  %v437 = vmul.f32 %v434, %v226
  %v438 = vmul.f32 %v389, %v234
  %v439 = vmul.f32 %v390, %v238
  %440 = vrot.lane.b32.xlu0 %v389, 122
  %v441 = vpop.permute.xlu0 %440
  %442 = vrot.lane.b32.xlu0 %v390, 122
  %v443 = vpop.permute.xlu0 %442
  %v444 = vsel %vm251, %v441, %v443
  %v445 = vsel %vm251, %v443, %v441
  %v446 = vmul.f32 %v444, %v259
  %v447 = vmul.f32 %v445, %v263
  %448 = vrot.lane.b32.xlu0 %v389, 121
  %v449 = vpop.permute.xlu0 %448
  %450 = vrot.lane.b32.xlu0 %v390, 121
  %v451 = vpop.permute.xlu0 %450
  %v452 = vsel %vm276, %v449, %v451
  %v453 = vsel %vm276, %v451, %v449
  %v454 = vmul.f32 %v452, %v284
  %v455 = vmul.f32 %v453, %v288
  %456 = vrot.lane.b32.xlu0 %v389, 120
  %v457 = vpop.permute.xlu0 %456
  %458 = vrot.lane.b32.xlu0 %v390, 120
  %v459 = vpop.permute.xlu0 %458
  %v460 = vsel %vm301, %v457, %v459
  %v461 = vsel %vm301, %v459, %v457
  %v462 = vmul.f32 %v460, %v309
  %v463 = vmul.f32 %v461, %v313
  %v464 = vpack.c.bf16 %v412, %v404
  %v465 = vpack.c.bf16 %v413, %v405
  %v466 = vpack.c.bf16 %v428, %v420
  %v467 = vpack.c.bf16 %v429, %v421
  %v468 = vpack.c.bf16 %v438, %v436
  %v469 = vpack.c.bf16 %v439, %v437
  %v470 = vpack.c.bf16 %v454, %v446
  %v471 = vpack.c.bf16 %v455, %v447
  %v472 = vpack.c.bf16 %v462, %v462
  %v473 = vpack.c.bf16 %v463, %v463
  %v474 = vld [vmem:[%s4] sm:$0xf]
  %vm475 = vcmask 588800
  %v477 = vsel %vm475, %v474, 0
  %vm479 = vcmask 1043456
  %v481 = vsel %vm479, %v472, 0
  %v484 = vsel %vm479, %v473, 0
  %486 = vmatprep.subr.bf16.mxu0 0
  %487 = vmatpush1.bf16.msra.mxu0 0
  %488 = vmatprep.subr.bf16.mxu0 0
  %489 = vmatpush1.bf16.msra.mxu0 0
  %490 = vmatprep.subr.bf16.mxu0 0
  %491 = vmatpush1.bf16.msra.mxu0 0
  %492 = vmatprep.subr.bf16.mxu0 %v484
  %493 = vmatpush1.bf16.msra.mxu0 %v481
  %494 = vmatprep.subr.bf16.mxu0 %v471
  %495 = vmatpush1.bf16.msra.mxu0 %v470
  %496 = vmatprep.subr.bf16.mxu0 %v469
  %497 = vmatpush1.bf16.msra.mxu0 %v468
  %498 = vmatprep.subr.bf16.mxu0 %v467
  %499 = vmatpush1.bf16.msra.mxu0 %v466
  %500 = vmatprep.subr.bf16.mxu0 %v465
  %501 = vmatpush1.bf16.msra.mxu0 %v464
  %502 = vmatprep.subr.bf16.mxu0 0
  %503 = vmatpush2.bf16.msra.mxu0 0
  %504 = vmatprep.subr.bf16.mxu0 0
  %505 = vmatpush2.bf16.msra.mxu0 0
  %506 = vmatprep.subr.bf16.mxu0 0
  %507 = vmatpush2.bf16.msra.mxu0 0
  %508 = vmatprep.subr.bf16.mxu0 0
  %509 = vmatpush2.bf16.msra.mxu0 0
  %510 = vmatprep.subr.bf16.mxu0 0
  %511 = vmatpush2.bf16.msra.mxu0 0
  %512 = vmatprep.subr.bf16.mxu0 0
  %513 = vmatpush2.bf16.msra.mxu0 0
  %514 = vmatprep.subr.bf16.mxu0 0
  %515 = vmatpush2.bf16.msra.mxu0 0
  %516 = vmatprep.subr.bf16.mxu0 0
  %517 = vmatpush2.bf16.msra.mxu0 0
  %518 = vmatprep.mubr.bf16.mxu0 0
  %519 = vmatmul.mubr.bf16.gmra.mxu0 %v477
  %v520 = vpop.f32.mrf.mxu0
  %v521 = vadd.f32 0.0, %v520
  %v522 = vpop.f32.mrf.mxu0
  %v523 = vadd.f32 0.0, %v522
  %v524 = vpop.f32.mrf.mxu0
  %v525 = vpop.f32.mrf.mxu0
  %526 = vdwg.mxu0
  %v527 = vadd.f32 %v396, %v521
  %v528 = vadd.f32 %v397, %v523
  %v529 = vld [vmem:[%s8] sm:$0xff]
  %v530 = vld [vmem:[%s8 + $0x8] sm:$0xff]
  %v531 = vpack.c.bf16 %v527, %v527
  %v532 = vpack.c.bf16 %v528, %v528
  %v535 = vunpack.c.l.b16 %v529
  %v536 = vunpack.c.h.b16 %v529
  %v537 = vunpack.c.l.b16 %v530
  %v538 = vunpack.c.h.b16 %v530
  %v539 = vpack.c.b16 %v537, %v535
  %v540 = vpack.c.b16 %v538, %v536
  %543 = vmatprep.subr.bf16.mxu0 0
  %544 = vmatpush1.bf16.xpose.msra.mxu0 0
  %545 = vmatprep.subr.bf16.mxu0 0
  %546 = vmatpush1.bf16.xpose.msra.mxu0 0
  %547 = vmatprep.subr.bf16.mxu0 0
  %548 = vmatpush1.bf16.xpose.msra.mxu0 0
  %549 = vmatprep.subr.bf16.mxu0 0
  %550 = vmatpush1.bf16.xpose.msra.mxu0 0
  %551 = vmatprep.subr.bf16.mxu0 0
  %552 = vmatpush1.bf16.xpose.msra.mxu0 0
  %553 = vmatprep.subr.bf16.mxu0 0
  %554 = vmatpush1.bf16.xpose.msra.mxu0 0
  %555 = vmatprep.subr.bf16.mxu0 0
  %556 = vmatpush1.bf16.xpose.msra.mxu0 0
  %557 = vmatprep.subr.bf16.mxu0 %v540
  %558 = vmatpush1.bf16.xpose.msra.mxu0 %v539
  %559 = vmatprep.subr.bf16.mxu0 0
  %560 = vmatpush2.bf16.xpose.msra.mxu0 0
  %561 = vmatprep.subr.bf16.mxu0 0
  %562 = vmatpush2.bf16.xpose.msra.mxu0 0
  %563 = vmatprep.subr.bf16.mxu0 0
  %564 = vmatpush2.bf16.xpose.msra.mxu0 0
  %565 = vmatprep.subr.bf16.mxu0 0
  %566 = vmatpush2.bf16.xpose.msra.mxu0 0
  %567 = vmatprep.subr.bf16.mxu0 0
  %568 = vmatpush2.bf16.xpose.msra.mxu0 0
  %569 = vmatprep.subr.bf16.mxu0 0
  %570 = vmatpush2.bf16.xpose.msra.mxu0 0
  %571 = vmatprep.subr.bf16.mxu0 0
  %572 = vmatpush2.bf16.xpose.msra.mxu0 0
  %573 = vmatprep.subr.bf16.mxu0 0
  %574 = vmatpush2.bf16.xpose.msra.mxu0 0
  %575 = vmatprep.mubr.bf16.mxu0 %v532
  %576 = vmatmul.mubr.bf16.gmra.mxu0 %v531
  %v577 = vpop.f32.mrf.mxu0
  %v578 = vadd.f32 0.0, %v577
  %v579 = vpop.f32.mrf.mxu0
  %v580 = vpop.f32.mrf.mxu0
  %v581 = vpop.f32.mrf.mxu0
  %582 = vdwg.mxu0
  %v583 = vsel %vm56, %v578, 0.0
  %v584 = vrot.slane %v583, 4
  %v585 = vadd.f32 %v583, %v584
  %v586 = vrot.slane %v585, 2
  %v587 = vadd.f32 %v585, %v586
  %v588 = vrot.slane %v587, 1
  %v589 = vadd.f32 %v587, %v588
  %v590 = vmul.f32 %v589, 0.0078125
  %v591 = vpack.c.bf16 %v590, %v590
  %v593 = vsel %vm56, %v591, 0
  %595 = vmatprep.subr.bf16.mxu0 0
  %596 = vmatpush1.bf16.msra.mxu0 0
  %597 = vmatprep.subr.bf16.mxu0 0
  %598 = vmatpush1.bf16.msra.mxu0 0
  %599 = vmatprep.subr.bf16.mxu0 0
  %600 = vmatpush1.bf16.msra.mxu0 0
  %601 = vmatprep.subr.bf16.mxu0 0
  %602 = vmatpush1.bf16.msra.mxu0 0
  %603 = vmatprep.subr.bf16.mxu0 0
  %604 = vmatpush1.bf16.msra.mxu0 0
  %605 = vmatprep.subr.bf16.mxu0 0
  %606 = vmatpush1.bf16.msra.mxu0 0
  %607 = vmatprep.subr.bf16.mxu0 0
  %608 = vmatpush1.bf16.msra.mxu0 0
  %609 = vmatprep.subr.bf16.mxu0 %v540
  %610 = vmatpush1.bf16.msra.mxu0 %v539
  %611 = vmatprep.subr.bf16.mxu0 0
  %612 = vmatpush2.bf16.msra.mxu0 0
  %613 = vmatprep.subr.bf16.mxu0 0
  %614 = vmatpush2.bf16.msra.mxu0 0
  %615 = vmatprep.subr.bf16.mxu0 0
  %616 = vmatpush2.bf16.msra.mxu0 0
  %617 = vmatprep.subr.bf16.mxu0 0
  %618 = vmatpush2.bf16.msra.mxu0 0
  %619 = vmatprep.subr.bf16.mxu0 0
  %620 = vmatpush2.bf16.msra.mxu0 0
  %621 = vmatprep.subr.bf16.mxu0 0
  %622 = vmatpush2.bf16.msra.mxu0 0
  %623 = vmatprep.subr.bf16.mxu0 0
  %624 = vmatpush2.bf16.msra.mxu0 0
  %625 = vmatprep.subr.bf16.mxu0 0
  %626 = vmatpush2.bf16.msra.mxu0 0
  %627 = vmatprep.mubr.bf16.mxu0 0
  %628 = vmatmul.mubr.bf16.gmra.mxu0 %v593
  %v629 = vpop.f32.mrf.mxu0
  %v630 = vadd.f32 0.0, %v629
  %v631 = vpop.f32.mrf.mxu0
  %v632 = vadd.f32 0.0, %v631
  %v633 = vpop.f32.mrf.mxu0
  %v634 = vpop.f32.mrf.mxu0
  %635 = vdwg.mxu0
  %v636 = vlaneseq
  %v637 = vshrl.u32 %v636, 7
  %v638 = vsub.s32 0, %v637
  %v639 = vrot.slane %v630, %v638
  %v640 = vlaneseq
  %v641 = vshrl.u32 %v640, 7
  %v642 = vsub.s32 0, %v641
  %v643 = vrot.slane %v632, %v642
  %v644 = vsub.f32 %v527, %v639
  %v645 = vsub.f32 %v528, %v643
  %v646 = vmul.f32 %v644, %v644
  %v647 = vmul.f32 %v645, %v645
  %v648 = vpack.c.bf16 %v646, %v646
  %v649 = vpack.c.bf16 %v647, %v647
  %650 = vmatprep.subr.bf16.mxu0 0
  %651 = vmatpush1.bf16.xpose.msra.mxu0 0
  %652 = vmatprep.subr.bf16.mxu0 0
  %653 = vmatpush1.bf16.xpose.msra.mxu0 0
  %654 = vmatprep.subr.bf16.mxu0 0
  %655 = vmatpush1.bf16.xpose.msra.mxu0 0
  %656 = vmatprep.subr.bf16.mxu0 0
  %657 = vmatpush1.bf16.xpose.msra.mxu0 0
  %658 = vmatprep.subr.bf16.mxu0 0
  %659 = vmatpush1.bf16.xpose.msra.mxu0 0
  %660 = vmatprep.subr.bf16.mxu0 0
  %661 = vmatpush1.bf16.xpose.msra.mxu0 0
  %662 = vmatprep.subr.bf16.mxu0 0
  %663 = vmatpush1.bf16.xpose.msra.mxu0 0
  %664 = vmatprep.subr.bf16.mxu0 %v540
  %665 = vmatpush1.bf16.xpose.msra.mxu0 %v539
  %666 = vmatprep.subr.bf16.mxu0 0
  %667 = vmatpush2.bf16.xpose.msra.mxu0 0
  %668 = vmatprep.subr.bf16.mxu0 0
  %669 = vmatpush2.bf16.xpose.msra.mxu0 0
  %670 = vmatprep.subr.bf16.mxu0 0
  %671 = vmatpush2.bf16.xpose.msra.mxu0 0
  %672 = vmatprep.subr.bf16.mxu0 0
  %673 = vmatpush2.bf16.xpose.msra.mxu0 0
  %674 = vmatprep.subr.bf16.mxu0 0
  %675 = vmatpush2.bf16.xpose.msra.mxu0 0
  %676 = vmatprep.subr.bf16.mxu0 0
  %677 = vmatpush2.bf16.xpose.msra.mxu0 0
  %678 = vmatprep.subr.bf16.mxu0 0
  %679 = vmatpush2.bf16.xpose.msra.mxu0 0
  %680 = vmatprep.subr.bf16.mxu0 0
  %681 = vmatpush2.bf16.xpose.msra.mxu0 0
  %682 = vmatprep.mubr.bf16.mxu0 %v649
  %683 = vmatmul.mubr.bf16.gmra.mxu0 %v648
  %v684 = vpop.f32.mrf.mxu0
  %v685 = vadd.f32 0.0, %v684
  %v686 = vpop.f32.mrf.mxu0
  %v687 = vpop.f32.mrf.mxu0
  %v688 = vpop.f32.mrf.mxu0
  %689 = vdwg.mxu0
  %v690 = vsel %vm56, %v685, 0.0
  %v691 = vrot.slane %v690, 4
  %v692 = vadd.f32 %v690, %v691
  %v693 = vrot.slane %v692, 2
  %v694 = vadd.f32 %v692, %v693
  %v695 = vrot.slane %v694, 1
  %v696 = vadd.f32 %v694, %v695
  %v697 = vmul.f32 %v696, 0.0078125
  %v698 = vpack.c.bf16 %v697, %v697
  %v699 = vld [vmem:[%s7] sm:$0xff]
  %v700 = vld [vmem:[%s7 + $0x8] sm:$0xff]
  %v701 = vld [vmem:[%s7 + $0x10] sm:$0xff]
  %v702 = vld [vmem:[%s7 + $0x18] sm:$0xff]
  %v704 = vsel %vm56, %v698, 0
  %706 = vmatprep.subr.bf16.mxu0 0
  %707 = vmatpush1.bf16.msra.mxu0 0
  %708 = vmatprep.subr.bf16.mxu0 0
  %709 = vmatpush1.bf16.msra.mxu0 0
  %710 = vmatprep.subr.bf16.mxu0 0
  %711 = vmatpush1.bf16.msra.mxu0 0
  %712 = vmatprep.subr.bf16.mxu0 0
  %713 = vmatpush1.bf16.msra.mxu0 0
  %714 = vmatprep.subr.bf16.mxu0 0
  %715 = vmatpush1.bf16.msra.mxu0 0
  %716 = vmatprep.subr.bf16.mxu0 0
  %717 = vmatpush1.bf16.msra.mxu0 0
  %718 = vmatprep.subr.bf16.mxu0 0
  %719 = vmatpush1.bf16.msra.mxu0 0
  %720 = vmatprep.subr.bf16.mxu0 %v540
  %721 = vmatpush1.bf16.msra.mxu0 %v539
  %722 = vmatprep.subr.bf16.mxu0 0
  %723 = vmatpush2.bf16.msra.mxu0 0
  %724 = vmatprep.subr.bf16.mxu0 0
  %725 = vmatpush2.bf16.msra.mxu0 0
  %726 = vmatprep.subr.bf16.mxu0 0
  %727 = vmatpush2.bf16.msra.mxu0 0
  %728 = vmatprep.subr.bf16.mxu0 0
  %729 = vmatpush2.bf16.msra.mxu0 0
  %730 = vmatprep.subr.bf16.mxu0 0
  %731 = vmatpush2.bf16.msra.mxu0 0
  %732 = vmatprep.subr.bf16.mxu0 0
  %733 = vmatpush2.bf16.msra.mxu0 0
  %734 = vmatprep.subr.bf16.mxu0 0
  %735 = vmatpush2.bf16.msra.mxu0 0
  %736 = vmatprep.subr.bf16.mxu0 0
  %737 = vmatpush2.bf16.msra.mxu0 0
  %738 = vmatprep.mubr.bf16.mxu0 0
  %739 = vmatmul.mubr.bf16.gmra.mxu0 %v704
  %v740 = vpop.f32.mrf.mxu0
  %v741 = vadd.f32 1e-05, %v740
  %v742 = vpop.f32.mrf.mxu0
  %v743 = vadd.f32 1e-05, %v742
  %v744 = vpop.f32.mrf.mxu0
  %v745 = vpop.f32.mrf.mxu0
  %746 = vdwg.mxu0
  %v747 = vrsqrt.pop %v741
  %v748 = vrsqrt.pop %v743
  %v749 = vlaneseq
  %v750 = vshrl.u32 %v749, 7
  %v751 = vsub.s32 0, %v750
  %v752 = vrot.slane %v747, %v751
  %v753 = vlaneseq
  %v754 = vshrl.u32 %v753, 7
  %v755 = vsub.s32 0, %v754
  %v756 = vrot.slane %v748, %v755
  %v757 = vmul.f32 %v644, %v752
  %v758 = vmul.f32 %v645, %v756
  %v759 = vmul.f32 %v757, %v699
  %v760 = vmul.f32 %v758, %v700
  %v761 = vadd.f32 %v759, %v701
  %v762 = vadd.f32 %v760, %v702
  %v763 = vld [vmem:[%s9] sm:$0xf]
  %v764 = vld [vmem:[%s9 + $0x4] sm:$0xf]
  %v765 = vpack.c.bf16 %v761, %v761
  %v766 = vpack.c.bf16 %v762, %v762
  %v769 = vunpack.c.l.b16 %v763
  %v770 = vunpack.c.l.b16 %v764
  %v771 = vpack.c.b16 %v770, %v769
  %vm772 = vcmask 64512
  %v774 = vsel %vm772, %v771, 0
  %v777 = vsel %vm479, %v765, 0
  %v780 = vsel %vm479, %v766, 0
  %782 = vmatprep.subr.bf16.mxu0 0
  %783 = vmatpush1.bf16.msra.mxu0 0
  %784 = vmatprep.subr.bf16.mxu0 0
  %785 = vmatpush1.bf16.msra.mxu0 0
  %786 = vmatprep.subr.bf16.mxu0 0
  %787 = vmatpush1.bf16.msra.mxu0 0
  %788 = vmatprep.subr.bf16.mxu0 0
  %789 = vmatpush1.bf16.msra.mxu0 0
  %790 = vmatprep.subr.bf16.mxu0 0
  %791 = vmatpush1.bf16.msra.mxu0 0
  %792 = vmatprep.subr.bf16.mxu0 0
  %793 = vmatpush1.bf16.msra.mxu0 0
  %794 = vmatprep.subr.bf16.mxu0 0
  %795 = vmatpush1.bf16.msra.mxu0 0
  %796 = vmatprep.subr.bf16.mxu0 %v780
  %797 = vmatpush1.bf16.msra.mxu0 %v777
  %798 = vmatprep.subr.bf16.mxu0 0
  %799 = vmatpush2.bf16.msra.mxu0 0
  %800 = vmatprep.subr.bf16.mxu0 0
  %801 = vmatpush2.bf16.msra.mxu0 0
  %802 = vmatprep.subr.bf16.mxu0 0
  %803 = vmatpush2.bf16.msra.mxu0 0
  %804 = vmatprep.subr.bf16.mxu0 0
  %805 = vmatpush2.bf16.msra.mxu0 0
  %806 = vmatprep.subr.bf16.mxu0 0
  %807 = vmatpush2.bf16.msra.mxu0 0
  %808 = vmatprep.subr.bf16.mxu0 0
  %809 = vmatpush2.bf16.msra.mxu0 0
  %810 = vmatprep.subr.bf16.mxu0 0
  %811 = vmatpush2.bf16.msra.mxu0 0
  %812 = vmatprep.subr.bf16.mxu0 0
  %813 = vmatpush2.bf16.msra.mxu0 0
  %814 = vmatprep.mubr.bf16.mxu0 0
  %815 = vmatmul.mubr.bf16.gmra.mxu0 %v774
  %v816 = vpop.f32.mrf.mxu0
  %v817 = vadd.f32 0.0, %v816
  %v818 = vpop.f32.mrf.mxu0
  %v819 = vadd.f32 0.0, %v818
  %v820 = vpop.f32.mrf.mxu0
  %v821 = vadd.f32 0.0, %v820
  %v822 = vpop.f32.mrf.mxu0
  %v823 = vadd.f32 0.0, %v822
  %824 = vdwg.mxu0
  %v825 = vpack.c.bf16 %v817, %v817
  %v826 = vpack.c.bf16 %v819, %v819
  %v827 = vld [vmem:[%s10] sm:$0xff]
  %v828 = vld [vmem:[%s10 + $0x8] sm:$0xff]
  %v829 = vld [vmem:[%s10 + $0x10] sm:$0xff]
  %v830 = vld [vmem:[%s10 + $0x18] sm:$0xff]
  %v831 = vld [vmem:[%s10 + $0x20] sm:$0xff]
  %v832 = vld [vmem:[%s10 + $0x28] sm:$0xff]
  %v833 = vld [vmem:[%s10 + $0x30] sm:$0xff]
  %v834 = vld [vmem:[%s10 + $0x38] sm:$0xff]
  %v835 = vld [vmem:[%s10 + $0x40] sm:$0xff]
  %v836 = vld [vmem:[%s10 + $0x48] sm:$0xff]
  %v837 = vld [vmem:[%s10 + $0x50] sm:$0xff]
  %v838 = vld [vmem:[%s10 + $0x58] sm:$0xff]
  %v839 = vld [vmem:[%s10 + $0x60] sm:$0xff]
  %v840 = vld [vmem:[%s10 + $0x68] sm:$0xff]
  %v841 = vld [vmem:[%s10 + $0x70] sm:$0xff]
  %v842 = vld [vmem:[%s10 + $0x78] sm:$0xff]
  %v843 = vld [vmem:[%s10 + $0x80] sm:$0xff]
  %v844 = vld [vmem:[%s10 + $0x88] sm:$0xff]
  %v845 = vld [vmem:[%s10 + $0x90] sm:$0xff]
  %v846 = vld [vmem:[%s10 + $0x98] sm:$0xff]
  %v847 = vld [vmem:[%s10 + $0xa0] sm:$0xff]
  %v848 = vld [vmem:[%s10 + $0xa8] sm:$0xff]
  %v849 = vld [vmem:[%s10 + $0xb0] sm:$0xff]
  %v850 = vld [vmem:[%s10 + $0xb8] sm:$0xff]
  %v851 = vld [vmem:[%s10 + $0xc0] sm:$0xff]
  %v852 = vld [vmem:[%s10 + $0xc8] sm:$0xff]
  %v853 = vld [vmem:[%s10 + $0xd0] sm:$0xff]
  %v854 = vld [vmem:[%s10 + $0xd8] sm:$0xff]
  %v855 = vld [vmem:[%s10 + $0xe0] sm:$0xff]
  %v856 = vld [vmem:[%s10 + $0xe8] sm:$0xff]
  %v857 = vld [vmem:[%s10 + $0xf0] sm:$0xff]
  %v858 = vld [vmem:[%s10 + $0xf8] sm:$0xff]
  %v859 = vpack.c.bf16 %v821, %v821
  %v860 = vpack.c.bf16 %v823, %v823
  %s861 = scalar_lea.vmem %s10, 256
  %v862 = vld [vmem:[%s861] sm:$0xff]
  %v863 = vld [vmem:[%s861 + $0x8] sm:$0xff]
  %v864 = vld [vmem:[%s861 + $0x10] sm:$0xff]
  %v865 = vld [vmem:[%s861 + $0x18] sm:$0xff]
  %v866 = vld [vmem:[%s861 + $0x20] sm:$0xff]
  %v867 = vld [vmem:[%s861 + $0x28] sm:$0xff]
  %v868 = vld [vmem:[%s861 + $0x30] sm:$0xff]
  %v869 = vld [vmem:[%s861 + $0x38] sm:$0xff]
  %v870 = vld [vmem:[%s861 + $0x40] sm:$0xff]
  %v871 = vld [vmem:[%s861 + $0x48] sm:$0xff]
  %v872 = vld [vmem:[%s861 + $0x50] sm:$0xff]
  %v873 = vld [vmem:[%s861 + $0x58] sm:$0xff]
  %v874 = vld [vmem:[%s861 + $0x60] sm:$0xff]
  %v875 = vld [vmem:[%s861 + $0x68] sm:$0xff]
  %v876 = vld [vmem:[%s861 + $0x70] sm:$0xff]
  %v877 = vld [vmem:[%s861 + $0x78] sm:$0xff]
  %v878 = vld [vmem:[%s861 + $0x80] sm:$0xff]
  %v879 = vld [vmem:[%s861 + $0x88] sm:$0xff]
  %v880 = vld [vmem:[%s861 + $0x90] sm:$0xff]
  %v881 = vld [vmem:[%s861 + $0x98] sm:$0xff]
  %v882 = vld [vmem:[%s861 + $0xa0] sm:$0xff]
  %v883 = vld [vmem:[%s861 + $0xa8] sm:$0xff]
  %v884 = vld [vmem:[%s861 + $0xb0] sm:$0xff]
  %v885 = vld [vmem:[%s861 + $0xb8] sm:$0xff]
  %v886 = vld [vmem:[%s861 + $0xc0] sm:$0xff]
  %v887 = vld [vmem:[%s861 + $0xc8] sm:$0xff]
  %v888 = vld [vmem:[%s861 + $0xd0] sm:$0xff]
  %v889 = vld [vmem:[%s861 + $0xd8] sm:$0xff]
  %v890 = vld [vmem:[%s861 + $0xe0] sm:$0xff]
  %v891 = vld [vmem:[%s861 + $0xe8] sm:$0xff]
  %v892 = vld [vmem:[%s861 + $0xf0] sm:$0xff]
  %v893 = vld [vmem:[%s861 + $0xf8] sm:$0xff]
  %v926 = vunpack.c.l.b16 %v862
  %v927 = vunpack.c.h.b16 %v862
  %v928 = vunpack.c.l.b16 %v863
  %v929 = vunpack.c.h.b16 %v863
  %v930 = vunpack.c.l.b16 %v864
  %v931 = vunpack.c.h.b16 %v864
  %v932 = vunpack.c.l.b16 %v865
  %v933 = vunpack.c.h.b16 %v865
  %v934 = vunpack.c.l.b16 %v866
  %v935 = vunpack.c.h.b16 %v866
  %v936 = vunpack.c.l.b16 %v867
  %v937 = vunpack.c.h.b16 %v867
  %v938 = vunpack.c.l.b16 %v868
  %v939 = vunpack.c.h.b16 %v868
  %v940 = vunpack.c.l.b16 %v869
  %v941 = vunpack.c.h.b16 %v869
  %v942 = vunpack.c.l.b16 %v870
  %v943 = vunpack.c.h.b16 %v870
  %v944 = vunpack.c.l.b16 %v871
  %v945 = vunpack.c.h.b16 %v871
  %v946 = vunpack.c.l.b16 %v872
  %v947 = vunpack.c.h.b16 %v872
  %v948 = vunpack.c.l.b16 %v873
  %v949 = vunpack.c.h.b16 %v873
  %v950 = vunpack.c.l.b16 %v874
  %v951 = vunpack.c.h.b16 %v874
  %v952 = vunpack.c.l.b16 %v875
  %v953 = vunpack.c.h.b16 %v875
  %v954 = vunpack.c.l.b16 %v876
  %v955 = vunpack.c.h.b16 %v876
  %v956 = vunpack.c.l.b16 %v877
  %v957 = vunpack.c.h.b16 %v877
  %v958 = vunpack.c.l.b16 %v878
  %v959 = vunpack.c.h.b16 %v878
  %v960 = vunpack.c.l.b16 %v879
  %v961 = vunpack.c.h.b16 %v879
  %v962 = vunpack.c.l.b16 %v880
  %v963 = vunpack.c.h.b16 %v880
  %v964 = vunpack.c.l.b16 %v881
  %v965 = vunpack.c.h.b16 %v881
  %v966 = vunpack.c.l.b16 %v882
  %v967 = vunpack.c.h.b16 %v882
  %v968 = vunpack.c.l.b16 %v883
  %v969 = vunpack.c.h.b16 %v883
  %v970 = vunpack.c.l.b16 %v884
  %v971 = vunpack.c.h.b16 %v884
  %v972 = vunpack.c.l.b16 %v885
  %v973 = vunpack.c.h.b16 %v885
  %v974 = vunpack.c.l.b16 %v886
  %v975 = vunpack.c.h.b16 %v886
  %v976 = vunpack.c.l.b16 %v887
  %v977 = vunpack.c.h.b16 %v887
  %v978 = vunpack.c.l.b16 %v888
  %v979 = vunpack.c.h.b16 %v888
  %v980 = vunpack.c.l.b16 %v889
  %v981 = vunpack.c.h.b16 %v889
  %v982 = vunpack.c.l.b16 %v890
  %v983 = vunpack.c.h.b16 %v890
  %v984 = vunpack.c.l.b16 %v891
  %v985 = vunpack.c.h.b16 %v891
  %v986 = vunpack.c.l.b16 %v892
  %v987 = vunpack.c.h.b16 %v892
  %v988 = vunpack.c.l.b16 %v893
  %v989 = vunpack.c.h.b16 %v893
  %v990 = vpack.c.b16 %v928, %v926
  %v991 = vpack.c.b16 %v929, %v927
  %v992 = vpack.c.b16 %v932, %v930
  %v993 = vpack.c.b16 %v933, %v931
  %v994 = vpack.c.b16 %v936, %v934
  %v995 = vpack.c.b16 %v937, %v935
  %v996 = vpack.c.b16 %v940, %v938
  %v997 = vpack.c.b16 %v941, %v939
  %v998 = vpack.c.b16 %v944, %v942
  %v999 = vpack.c.b16 %v945, %v943
  %v1000 = vpack.c.b16 %v948, %v946
  %v1001 = vpack.c.b16 %v949, %v947
  %v1002 = vpack.c.b16 %v952, %v950
  %v1003 = vpack.c.b16 %v953, %v951
  %v1004 = vpack.c.b16 %v956, %v954
  %v1005 = vpack.c.b16 %v957, %v955
  %v1006 = vpack.c.b16 %v960, %v958
  %v1007 = vpack.c.b16 %v961, %v959
  %v1008 = vpack.c.b16 %v964, %v962
  %v1009 = vpack.c.b16 %v965, %v963
  %v1010 = vpack.c.b16 %v968, %v966
  %v1011 = vpack.c.b16 %v969, %v967
  %v1012 = vpack.c.b16 %v972, %v970
  %v1013 = vpack.c.b16 %v973, %v971
  %v1014 = vpack.c.b16 %v976, %v974
  %v1015 = vpack.c.b16 %v977, %v975
  %v1016 = vpack.c.b16 %v980, %v978
  %v1017 = vpack.c.b16 %v981, %v979
  %v1018 = vpack.c.b16 %v984, %v982
  %v1019 = vpack.c.b16 %v985, %v983
  %v1020 = vpack.c.b16 %v988, %v986
  %v1021 = vpack.c.b16 %v989, %v987
  %1054 = vmatprep.subr.bf16.mxu0 %v1005
  %1055 = vmatpush1.bf16.msra.mxu0 %v1004
  %1056 = vmatprep.subr.bf16.mxu0 %v1003
  %1057 = vmatpush1.bf16.msra.mxu0 %v1002
  %1058 = vmatprep.subr.bf16.mxu0 %v1001
  %1059 = vmatpush1.bf16.msra.mxu0 %v1000
  %1060 = vmatprep.subr.bf16.mxu0 %v999
  %1061 = vmatpush1.bf16.msra.mxu0 %v998
  %1062 = vmatprep.subr.bf16.mxu0 %v997
  %1063 = vmatpush1.bf16.msra.mxu0 %v996
  %1064 = vmatprep.subr.bf16.mxu0 %v995
  %1065 = vmatpush1.bf16.msra.mxu0 %v994
  %1066 = vmatprep.subr.bf16.mxu0 %v993
  %1067 = vmatpush1.bf16.msra.mxu0 %v992
  %1068 = vmatprep.subr.bf16.mxu0 %v991
  %1069 = vmatpush1.bf16.msra.mxu0 %v990
  %1070 = vmatprep.subr.bf16.mxu0 %v1021
  %1071 = vmatpush2.bf16.msra.mxu0 %v1020
  %1072 = vmatprep.subr.bf16.mxu0 %v1019
  %1073 = vmatpush2.bf16.msra.mxu0 %v1018
  %1074 = vmatprep.subr.bf16.mxu0 %v1017
  %1075 = vmatpush2.bf16.msra.mxu0 %v1016
  %1076 = vmatprep.subr.bf16.mxu0 %v1015
  %1077 = vmatpush2.bf16.msra.mxu0 %v1014
  %1078 = vmatprep.subr.bf16.mxu0 %v1013
  %1079 = vmatpush2.bf16.msra.mxu0 %v1012
  %1080 = vmatprep.subr.bf16.mxu0 %v1011
  %1081 = vmatpush2.bf16.msra.mxu0 %v1010
  %1082 = vmatprep.subr.bf16.mxu0 %v1009
  %1083 = vmatpush2.bf16.msra.mxu0 %v1008
  %1084 = vmatprep.subr.bf16.mxu0 %v1007
  %1085 = vmatpush2.bf16.msra.mxu0 %v1006
  %1086 = vmatprep.mubr.bf16.mxu0 %v860
  %1087 = vmatmul.mubr.bf16.gmra.mxu0 %v859
  %v1088 = vpop.f32.mrf.mxu0
  %v1089 = vadd.f32 0.0, %v1088
  %v1090 = vpop.f32.mrf.mxu0
  %v1091 = vadd.f32 0.0, %v1090
  %v1092 = vpop.f32.mrf.mxu0
  %v1093 = vpop.f32.mrf.mxu0
  %1094 = vdwg.mxu0
  %v1127 = vunpack.c.l.b16 %v827
  %v1128 = vunpack.c.h.b16 %v827
  %v1129 = vunpack.c.l.b16 %v828
  %v1130 = vunpack.c.h.b16 %v828
  %v1131 = vunpack.c.l.b16 %v829
  %v1132 = vunpack.c.h.b16 %v829
  %v1133 = vunpack.c.l.b16 %v830
  %v1134 = vunpack.c.h.b16 %v830
  %v1135 = vunpack.c.l.b16 %v831
  %v1136 = vunpack.c.h.b16 %v831
  %v1137 = vunpack.c.l.b16 %v832
  %v1138 = vunpack.c.h.b16 %v832
  %v1139 = vunpack.c.l.b16 %v833
  %v1140 = vunpack.c.h.b16 %v833
  %v1141 = vunpack.c.l.b16 %v834
  %v1142 = vunpack.c.h.b16 %v834
  %v1143 = vunpack.c.l.b16 %v835
  %v1144 = vunpack.c.h.b16 %v835
  %v1145 = vunpack.c.l.b16 %v836
  %v1146 = vunpack.c.h.b16 %v836
  %v1147 = vunpack.c.l.b16 %v837
  %v1148 = vunpack.c.h.b16 %v837
  %v1149 = vunpack.c.l.b16 %v838
  %v1150 = vunpack.c.h.b16 %v838
  %v1151 = vunpack.c.l.b16 %v839
  %v1152 = vunpack.c.h.b16 %v839
  %v1153 = vunpack.c.l.b16 %v840
  %v1154 = vunpack.c.h.b16 %v840
  %v1155 = vunpack.c.l.b16 %v841
  %v1156 = vunpack.c.h.b16 %v841
  %v1157 = vunpack.c.l.b16 %v842
  %v1158 = vunpack.c.h.b16 %v842
  %v1159 = vunpack.c.l.b16 %v843
  %v1160 = vunpack.c.h.b16 %v843
  %v1161 = vunpack.c.l.b16 %v844
  %v1162 = vunpack.c.h.b16 %v844
  %v1163 = vunpack.c.l.b16 %v845
  %v1164 = vunpack.c.h.b16 %v845
  %v1165 = vunpack.c.l.b16 %v846
  %v1166 = vunpack.c.h.b16 %v846
  %v1167 = vunpack.c.l.b16 %v847
  %v1168 = vunpack.c.h.b16 %v847
  %v1169 = vunpack.c.l.b16 %v848
  %v1170 = vunpack.c.h.b16 %v848
  %v1171 = vunpack.c.l.b16 %v849
  %v1172 = vunpack.c.h.b16 %v849
  %v1173 = vunpack.c.l.b16 %v850
  %v1174 = vunpack.c.h.b16 %v850
  %v1175 = vunpack.c.l.b16 %v851
  %v1176 = vunpack.c.h.b16 %v851
  %v1177 = vunpack.c.l.b16 %v852
  %v1178 = vunpack.c.h.b16 %v852
  %v1179 = vunpack.c.l.b16 %v853
  %v1180 = vunpack.c.h.b16 %v853
  %v1181 = vunpack.c.l.b16 %v854
  %v1182 = vunpack.c.h.b16 %v854
  %v1183 = vunpack.c.l.b16 %v855
  %v1184 = vunpack.c.h.b16 %v855
  %v1185 = vunpack.c.l.b16 %v856
  %v1186 = vunpack.c.h.b16 %v856
  %v1187 = vunpack.c.l.b16 %v857
  %v1188 = vunpack.c.h.b16 %v857
  %v1189 = vunpack.c.l.b16 %v858
  %v1190 = vunpack.c.h.b16 %v858
  %v1191 = vpack.c.b16 %v1129, %v1127
  %v1192 = vpack.c.b16 %v1130, %v1128
  %v1193 = vpack.c.b16 %v1133, %v1131
  %v1194 = vpack.c.b16 %v1134, %v1132
  %v1195 = vpack.c.b16 %v1137, %v1135
  %v1196 = vpack.c.b16 %v1138, %v1136
  %v1197 = vpack.c.b16 %v1141, %v1139
  %v1198 = vpack.c.b16 %v1142, %v1140
  %v1199 = vpack.c.b16 %v1145, %v1143
  %v1200 = vpack.c.b16 %v1146, %v1144
  %v1201 = vpack.c.b16 %v1149, %v1147
  %v1202 = vpack.c.b16 %v1150, %v1148
  %v1203 = vpack.c.b16 %v1153, %v1151
  %v1204 = vpack.c.b16 %v1154, %v1152
  %v1205 = vpack.c.b16 %v1157, %v1155
  %v1206 = vpack.c.b16 %v1158, %v1156
  %v1207 = vpack.c.b16 %v1161, %v1159
  %v1208 = vpack.c.b16 %v1162, %v1160
  %v1209 = vpack.c.b16 %v1165, %v1163
  %v1210 = vpack.c.b16 %v1166, %v1164
  %v1211 = vpack.c.b16 %v1169, %v1167
  %v1212 = vpack.c.b16 %v1170, %v1168
  %v1213 = vpack.c.b16 %v1173, %v1171
  %v1214 = vpack.c.b16 %v1174, %v1172
  %v1215 = vpack.c.b16 %v1177, %v1175
  %v1216 = vpack.c.b16 %v1178, %v1176
  %v1217 = vpack.c.b16 %v1181, %v1179
  %v1218 = vpack.c.b16 %v1182, %v1180
  %v1219 = vpack.c.b16 %v1185, %v1183
  %v1220 = vpack.c.b16 %v1186, %v1184
  %v1221 = vpack.c.b16 %v1189, %v1187
  %v1222 = vpack.c.b16 %v1190, %v1188
  %1255 = vmatprep.subr.bf16.mxu0 %v1206
  %1256 = vmatpush1.bf16.msra.mxu0 %v1205
  %1257 = vmatprep.subr.bf16.mxu0 %v1204
  %1258 = vmatpush1.bf16.msra.mxu0 %v1203
  %1259 = vmatprep.subr.bf16.mxu0 %v1202
  %1260 = vmatpush1.bf16.msra.mxu0 %v1201
  %1261 = vmatprep.subr.bf16.mxu0 %v1200
  %1262 = vmatpush1.bf16.msra.mxu0 %v1199
  %1263 = vmatprep.subr.bf16.mxu0 %v1198
  %1264 = vmatpush1.bf16.msra.mxu0 %v1197
  %1265 = vmatprep.subr.bf16.mxu0 %v1196
  %1266 = vmatpush1.bf16.msra.mxu0 %v1195
  %1267 = vmatprep.subr.bf16.mxu0 %v1194
  %1268 = vmatpush1.bf16.msra.mxu0 %v1193
  %1269 = vmatprep.subr.bf16.mxu0 %v1192
  %1270 = vmatpush1.bf16.msra.mxu0 %v1191
  %1271 = vmatprep.subr.bf16.mxu0 %v1222
  %1272 = vmatpush2.bf16.msra.mxu0 %v1221
  %1273 = vmatprep.subr.bf16.mxu0 %v1220
  %1274 = vmatpush2.bf16.msra.mxu0 %v1219
  %1275 = vmatprep.subr.bf16.mxu0 %v1218
  %1276 = vmatpush2.bf16.msra.mxu0 %v1217
  %1277 = vmatprep.subr.bf16.mxu0 %v1216
  %1278 = vmatpush2.bf16.msra.mxu0 %v1215
  %1279 = vmatprep.subr.bf16.mxu0 %v1214
  %1280 = vmatpush2.bf16.msra.mxu0 %v1213
  %1281 = vmatprep.subr.bf16.mxu0 %v1212
  %1282 = vmatpush2.bf16.msra.mxu0 %v1211
  %1283 = vmatprep.subr.bf16.mxu0 %v1210
  %1284 = vmatpush2.bf16.msra.mxu0 %v1209
  %1285 = vmatprep.subr.bf16.mxu0 %v1208
  %1286 = vmatpush2.bf16.msra.mxu0 %v1207
  %1287 = vmatprep.mubr.bf16.mxu0 %v826
  %1288 = vmatmul.mubr.bf16.gmra.mxu0 %v825
  %v1289 = vpop.f32.mrf.mxu0
  %v1290 = vadd.f32 %v1089, %v1289
  %v1291 = vpop.f32.mrf.mxu0
  %v1292 = vadd.f32 %v1091, %v1291
  %v1293 = vpop.f32.mrf.mxu0
  %v1294 = vpop.f32.mrf.mxu0
  %1295 = vdwg.mxu0
  %1296 = vset.pattern.permute.xlu0 1
  %1297 = vperm.xlu0 %1296, %v103
  %v1298 = vpop.permute.xlu0 %1297
  %v1300 = vadd.f32 %v1290, %v1298
  %v1301 = vadd.f32 %v1292, %v1298
  %v1302 = vadd.f32 %v1300, %v761
  %v1303 = vadd.f32 %v1301, %v762
  %v1304 = vmax.f32 %v1302, 0.0
  %v1305 = vmax.f32 %v1303, 0.0
  %v1306 = vadd.f32 %v1304, %v99
  %v1307 = vadd.f32 %v1305, %v101
  %1308 = vset.pattern.permute.xlu0 2
  %1309 = vperm.xlu0 %1308, %v103
  %v1310 = vpop.permute.xlu0 %1309
  %v1312 = vadd.f32 %v1306, %v1310
  %v1313 = vadd.f32 %v1307, %v1310
  %1314 = vst [vmem:[%s11] sm:$0xff] %v1312
  %1315 = vst [vmem:[%s11 + $0x8] sm:$0xff] %v1313
  // Predicated region
  $region46: #{up_block_forward.1} parent=0 // pred_check
    _
  $region47: #{up_block_forward.1} parent=0 // pred_check_branch
    %1317 = sbr.rel (0) target = $region49
  $region48: #{up_block_forward.1} parent=0 // pred_region
    _
  $region49: #{up_block_forward.1} parent=0 // pred_fallthru
    _
  // Predicated region
  $region50: #{up_block_forward.1} parent=0 // pred_check
    _
  $region51: #{up_block_forward.1} parent=0 // pred_check_branch
    %1319 = sbr.rel (0) target = $region53
  $region52: #{up_block_forward.1} parent=0 // pred_region
    _
  $region53: #{up_block_forward.1} parent=0 // pred_fallthru
    _

</llo_original>
